<compile_context>
chip_gen: v5e
topology: v5e:2x2
jax: 0.10.0
libtpu: 0.0.40
codegen_flags: <defaults>
</compile_context>

<pallas_src>
import jax
import jax.numpy as jnp
from jax.experimental import pallas as pl
from jax.experimental.pallas import tpu as pltpu

HIDDEN_DIM = 64
LOW_DIM = 32
N_CLASSES = 10
IN_DIM = 784

IN_PAD = 896        # 7 * 128 — lane-dense K for the dominant first matmul
OUT_PAD = 128       # lane-dense output tile (sliced back to N_CLASSES in wrapper)
TILE_B_MAX = 512    # batch tile; fits comfortably in default scoped VMEM on all chips


def _round_up(n, m):
    return ((n + m - 1) // m) * m


def _mlp_kernel(x_ref,
                w1, b1, w2, b2, w3, b3, w4, b4, w5, b5,
                wf1, bf1, wf2, bf2, wl, bl,
                out_ref):
    def linear(h, w_ref, b_ref):
        return jnp.dot(h, w_ref[...], preferred_element_type=jnp.float32) + b_ref[...]

    h = x_ref[...]

    # 5-layer trunk: Linear+ReLU x4, then Linear (no activation).
    h = jnp.maximum(linear(h, w1, b1), 0.0)
    h = jnp.maximum(linear(h, w2, b2), 0.0)
    h = jnp.maximum(linear(h, w3, b3), 0.0)
    h = jnp.maximum(linear(h, w4, b4), 0.0)
    h = linear(h, w5, b5)

    # Projection head.
    p = linear(h, wf1, bf1)
    p = jnp.where(p >= 0.0, p, 0.1 * p)            # LeakyReLU(0.1)
    p = linear(p, wf2, bf2)

    # Normalize(power=2): x / (sum(x^2, dim=1))^(1/2)  ==  x * rsqrt(sum(x^2))
    # (rsqrt runs on the EUP slot; no eps, matching the PyTorch module exactly).
    inv_norm = jax.lax.rsqrt(jnp.sum(p * p, axis=1, keepdims=True))
    p = p * inv_norm

    out_ref[...] = linear(p, wl, bl).astype(out_ref.dtype)


def five_layer_mlp(x, params, tile_b=None):
    """x: (B, 784) float32.  params: flat list of (in,out) weights and (1,out) biases."""
    B = x.shape[0]
    if tile_b is None:
        tile_b = min(TILE_B_MAX, _round_up(B, 128))
    Bp = _round_up(B, tile_b)

    # --- one-time padding in the wrapper (zero cols in x, zero rows in w1,
    #     zero cols in fc_last weight/bias) ---
    x_p = jnp.pad(x, ((0, Bp - B), (0, IN_PAD - IN_DIM)))

    params = list(params)
    w1 = jnp.pad(params[0], ((0, IN_PAD - IN_DIM), (0, 0)))       # (896, 64)
    wl = jnp.pad(params[-2], ((0, 0), (0, OUT_PAD - N_CLASSES)))  # (32, 128)
    bl = jnp.pad(params[-1], ((0, 0), (0, OUT_PAD - N_CLASSES)))  # (1, 128)
    padded_params = [w1] + params[1:-2] + [wl, bl]

    grid = (pl.cdiv(Bp, tile_b),)

    x_spec = pl.BlockSpec((tile_b, IN_PAD), lambda i: (i, 0))
    # Weights/biases: full-array blocks with a constant index_map -> loaded once,
    # stay resident in VMEM across all batch tiles.
    w_specs = [pl.BlockSpec(p.shape, lambda i: (0, 0)) for p in padded_params]
    out_spec = pl.BlockSpec((tile_b, OUT_PAD), lambda i: (i, 0))

    out_padded = pl.pallas_call(
        _mlp_kernel,
        out_shape=jax.ShapeDtypeStruct((Bp, OUT_PAD), jnp.float32),
        grid=grid,
        in_specs=[x_spec] + w_specs,
        out_specs=out_spec,
        compiler_params=pltpu.CompilerParams(
            dimension_semantics=("parallel",)),
    )(x_p, *padded_params)

    return out_padded[:B, :N_CLASSES]


def init_params(key):
    """Deterministic synthetic init; shapes follow the nn.Module __init__."""
    dims = [
        (IN_DIM, HIDDEN_DIM),      # layers.0
        (HIDDEN_DIM, HIDDEN_DIM),  # layers.2
        (HIDDEN_DIM, HIDDEN_DIM),  # layers.4
        (HIDDEN_DIM, HIDDEN_DIM),  # layers.6
        (HIDDEN_DIM, HIDDEN_DIM),  # layers.8
        (HIDDEN_DIM, HIDDEN_DIM),  # fc1
        (HIDDEN_DIM, LOW_DIM),     # fc2
        (LOW_DIM, N_CLASSES),      # fc_last
    ]
    params = []
    for (din, dout) in dims:
        key, kw, kb = jax.random.split(key, 3)
        bound = 1.0 / jnp.sqrt(din)
        w = jax.random.uniform(kw, (din, dout), jnp.float32, -bound, bound)
        b = jax.random.uniform(kb, (1, dout), jnp.float32, -bound, bound)
        params += [w, b]
    return params


def reference_forward(x, params):
    """Pure-JAX reference with identical semantics (for sanity check)."""
    (w1, b1, w2, b2, w3, b3, w4, b4, w5, b5,
     wf1, bf1, wf2, bf2, wl, bl) = params
    hi = jax.lax.Precision.HIGHEST

    def mm(a, b):
        return jnp.dot(a, b, precision=hi)

    h = x
    h = jnp.maximum(mm(h, w1) + b1, 0.0)
    h = jnp.maximum(mm(h, w2) + b2, 0.0)
    h = jnp.maximum(mm(h, w3) + b3, 0.0)
    h = jnp.maximum(mm(h, w4) + b4, 0.0)
    h = mm(h, w5) + b5
    p = mm(h, wf1) + bf1
    p = jnp.where(p >= 0.0, p, 0.1 * p)
    p = mm(p, wf2) + bf2
    p = p / jnp.sqrt(jnp.sum(p * p, axis=1, keepdims=True))
    return mm(p, wl) + bl


if __name__ == "__main__":
    key = jax.random.PRNGKey(0)
    key, kx = jax.random.split(key)

    B = 8
    # Module does x.view(B, -1); feed pre-flattened (B, 784) = e.g. MNIST 1x28x28.
    x = jax.random.normal(kx, (B, IN_DIM), jnp.float32)

    params = init_params(key)

    out = five_layer_mlp(x, params)
    out = jax.block_until_ready(out)

    ref = reference_forward(x, params)
    assert out.shape == (B, N_CLASSES)
    assert jnp.allclose(out, ref, atol=1e-4, rtol=1e-4), (
        float(jnp.max(jnp.abs(out - ref))))

    print("KERNEL_OK")
</pallas_src>

<mosaic_0001>
module attributes {stable_mosaic.version = 11 : i64} {
  func.func @_mlp_kernel(%arg0: i32, %arg1: memref<128x896xf32, #tpu.memory_space<vmem>>, %arg2: memref<896x64xf32, #tpu.memory_space<vmem>>, %arg3: memref<1x64xf32, #tpu.memory_space<vmem>>, %arg4: memref<64x64xf32, #tpu.memory_space<vmem>>, %arg5: memref<1x64xf32, #tpu.memory_space<vmem>>, %arg6: memref<64x64xf32, #tpu.memory_space<vmem>>, %arg7: memref<1x64xf32, #tpu.memory_space<vmem>>, %arg8: memref<64x64xf32, #tpu.memory_space<vmem>>, %arg9: memref<1x64xf32, #tpu.memory_space<vmem>>, %arg10: memref<64x64xf32, #tpu.memory_space<vmem>>, %arg11: memref<1x64xf32, #tpu.memory_space<vmem>>, %arg12: memref<64x64xf32, #tpu.memory_space<vmem>>, %arg13: memref<1x64xf32, #tpu.memory_space<vmem>>, %arg14: memref<64x32xf32, #tpu.memory_space<vmem>>, %arg15: memref<1x32xf32, #tpu.memory_space<vmem>>, %arg16: memref<32x128xf32, #tpu.memory_space<vmem>>, %arg17: memref<1x128xf32, #tpu.memory_space<vmem>>, %arg18: memref<128x128xf32, #tpu.memory_space<vmem>>) attributes {dimension_semantics = [#tpu.dimension_semantics<parallel>], iteration_bounds = array<i64: 1>, scalar_prefetch = 0 : i64, scratch_operands = 0 : i64, tpu.core_type = #tpu.core_type<tc>, window_params = [{transform_indices = @transform_0, window_bounds = array<i64: 128, 896>}, {pipeline_mode = #tpu.pipeline_mode<synchronous>, transform_indices = @transform_1, window_bounds = array<i64: 896, 64>}, {pipeline_mode = #tpu.pipeline_mode<synchronous>, transform_indices = @transform_2, window_bounds = array<i64: 1, 64>}, {pipeline_mode = #tpu.pipeline_mode<synchronous>, transform_indices = @transform_3, window_bounds = array<i64: 64, 64>}, {pipeline_mode = #tpu.pipeline_mode<synchronous>, transform_indices = @transform_4, window_bounds = array<i64: 1, 64>}, {pipeline_mode = #tpu.pipeline_mode<synchronous>, transform_indices = @transform_5, window_bounds = array<i64: 64, 64>}, {pipeline_mode = #tpu.pipeline_mode<synchronous>, transform_indices = @transform_6, window_bounds = array<i64: 1, 64>}, {pipeline_mode = #tpu.pipeline_mode<synchronous>, transform_indices = @transform_7, window_bounds = array<i64: 64, 64>}, {pipeline_mode = #tpu.pipeline_mode<synchronous>, transform_indices = @transform_8, window_bounds = array<i64: 1, 64>}, {pipeline_mode = #tpu.pipeline_mode<synchronous>, transform_indices = @transform_9, window_bounds = array<i64: 64, 64>}, {pipeline_mode = #tpu.pipeline_mode<synchronous>, transform_indices = @transform_10, window_bounds = array<i64: 1, 64>}, {pipeline_mode = #tpu.pipeline_mode<synchronous>, transform_indices = @transform_11, window_bounds = array<i64: 64, 64>}, {pipeline_mode = #tpu.pipeline_mode<synchronous>, transform_indices = @transform_12, window_bounds = array<i64: 1, 64>}, {pipeline_mode = #tpu.pipeline_mode<synchronous>, transform_indices = @transform_13, window_bounds = array<i64: 64, 32>}, {pipeline_mode = #tpu.pipeline_mode<synchronous>, transform_indices = @transform_14, window_bounds = array<i64: 1, 32>}, {pipeline_mode = #tpu.pipeline_mode<synchronous>, transform_indices = @transform_15, window_bounds = array<i64: 32, 128>}, {pipeline_mode = #tpu.pipeline_mode<synchronous>, transform_indices = @transform_16, window_bounds = array<i64: 1, 128>}, {transform_indices = @transform_17, window_bounds = array<i64: 128, 128>}]} {
    %c0 = arith.constant 0 : index
    %c0_0 = arith.constant 0 : index
    %0 = vector.load %arg1[%c0, %c0_0] : memref<128x896xf32, #tpu.memory_space<vmem>>, vector<128x896xf32>
    %c0_1 = arith.constant 0 : index
    %c0_2 = arith.constant 0 : index
    %1 = vector.load %arg2[%c0_1, %c0_2] : memref<896x64xf32, #tpu.memory_space<vmem>>, vector<896x64xf32>
    %cst = arith.constant dense<0.000000e+00> : vector<128x64xf32>
    %2 = tpu.matmul %0, %1, %cst {dimension_numbers = #tpu.dot_dimension_numbers<[1], [0], [0], [1], [0, 0, 1, 1], [], []>} : vector<128x896xf32>, vector<896x64xf32>, vector<128x64xf32> -> vector<128x64xf32>
    %c0_3 = arith.constant 0 : index
    %c0_4 = arith.constant 0 : index
    %3 = vector.load %arg3[%c0_3, %c0_4] : memref<1x64xf32, #tpu.memory_space<vmem>>, vector<1x64xf32>
    %4 = vector.broadcast %3 : vector<1x64xf32> to vector<128x64xf32>
    %5 = arith.addf %2, %4 : vector<128x64xf32>
    %cst_5 = arith.constant 0.000000e+00 : f32
    %6 = vector.broadcast %cst_5 : f32 to vector<128x64xf32>
    %7 = arith.maximumf %5, %6 : vector<128x64xf32>
    %c0_6 = arith.constant 0 : index
    %c0_7 = arith.constant 0 : index
    %8 = vector.load %arg4[%c0_6, %c0_7] : memref<64x64xf32, #tpu.memory_space<vmem>>, vector<64x64xf32>
    %cst_8 = arith.constant dense<0.000000e+00> : vector<128x64xf32>
    %9 = tpu.matmul %7, %8, %cst_8 {dimension_numbers = #tpu.dot_dimension_numbers<[1], [0], [0], [1], [0, 0, 1, 1], [], []>} : vector<128x64xf32>, vector<64x64xf32>, vector<128x64xf32> -> vector<128x64xf32>
    %c0_9 = arith.constant 0 : index
    %c0_10 = arith.constant 0 : index
    %10 = vector.load %arg5[%c0_9, %c0_10] : memref<1x64xf32, #tpu.memory_space<vmem>>, vector<1x64xf32>
    %11 = vector.broadcast %10 : vector<1x64xf32> to vector<128x64xf32>
    %12 = arith.addf %9, %11 : vector<128x64xf32>
    %cst_11 = arith.constant 0.000000e+00 : f32
    %13 = vector.broadcast %cst_11 : f32 to vector<128x64xf32>
    %14 = arith.maximumf %12, %13 : vector<128x64xf32>
    %c0_12 = arith.constant 0 : index
    %c0_13 = arith.constant 0 : index
    %15 = vector.load %arg6[%c0_12, %c0_13] : memref<64x64xf32, #tpu.memory_space<vmem>>, vector<64x64xf32>
    %cst_14 = arith.constant dense<0.000000e+00> : vector<128x64xf32>
    %16 = tpu.matmul %14, %15, %cst_14 {dimension_numbers = #tpu.dot_dimension_numbers<[1], [0], [0], [1], [0, 0, 1, 1], [], []>} : vector<128x64xf32>, vector<64x64xf32>, vector<128x64xf32> -> vector<128x64xf32>
    %c0_15 = arith.constant 0 : index
    %c0_16 = arith.constant 0 : index
    %17 = vector.load %arg7[%c0_15, %c0_16] : memref<1x64xf32, #tpu.memory_space<vmem>>, vector<1x64xf32>
    %18 = vector.broadcast %17 : vector<1x64xf32> to vector<128x64xf32>
    %19 = arith.addf %16, %18 : vector<128x64xf32>
    %cst_17 = arith.constant 0.000000e+00 : f32
    %20 = vector.broadcast %cst_17 : f32 to vector<128x64xf32>
    %21 = arith.maximumf %19, %20 : vector<128x64xf32>
    %c0_18 = arith.constant 0 : index
    %c0_19 = arith.constant 0 : index
    %22 = vector.load %arg8[%c0_18, %c0_19] : memref<64x64xf32, #tpu.memory_space<vmem>>, vector<64x64xf32>
    %cst_20 = arith.constant dense<0.000000e+00> : vector<128x64xf32>
    %23 = tpu.matmul %21, %22, %cst_20 {dimension_numbers = #tpu.dot_dimension_numbers<[1], [0], [0], [1], [0, 0, 1, 1], [], []>} : vector<128x64xf32>, vector<64x64xf32>, vector<128x64xf32> -> vector<128x64xf32>
    %c0_21 = arith.constant 0 : index
    %c0_22 = arith.constant 0 : index
    %24 = vector.load %arg9[%c0_21, %c0_22] : memref<1x64xf32, #tpu.memory_space<vmem>>, vector<1x64xf32>
    %25 = vector.broadcast %24 : vector<1x64xf32> to vector<128x64xf32>
    %26 = arith.addf %23, %25 : vector<128x64xf32>
    %cst_23 = arith.constant 0.000000e+00 : f32
    %27 = vector.broadcast %cst_23 : f32 to vector<128x64xf32>
    %28 = arith.maximumf %26, %27 : vector<128x64xf32>
    %c0_24 = arith.constant 0 : index
    %c0_25 = arith.constant 0 : index
    %29 = vector.load %arg10[%c0_24, %c0_25] : memref<64x64xf32, #tpu.memory_space<vmem>>, vector<64x64xf32>
    %cst_26 = arith.constant dense<0.000000e+00> : vector<128x64xf32>
    %30 = tpu.matmul %28, %29, %cst_26 {dimension_numbers = #tpu.dot_dimension_numbers<[1], [0], [0], [1], [0, 0, 1, 1], [], []>} : vector<128x64xf32>, vector<64x64xf32>, vector<128x64xf32> -> vector<128x64xf32>
    %c0_27 = arith.constant 0 : index
    %c0_28 = arith.constant 0 : index
    %31 = vector.load %arg11[%c0_27, %c0_28] : memref<1x64xf32, #tpu.memory_space<vmem>>, vector<1x64xf32>
    %32 = vector.broadcast %31 : vector<1x64xf32> to vector<128x64xf32>
    %33 = arith.addf %30, %32 : vector<128x64xf32>
    %c0_29 = arith.constant 0 : index
    %c0_30 = arith.constant 0 : index
    %34 = vector.load %arg12[%c0_29, %c0_30] : memref<64x64xf32, #tpu.memory_space<vmem>>, vector<64x64xf32>
    %cst_31 = arith.constant dense<0.000000e+00> : vector<128x64xf32>
    %35 = tpu.matmul %33, %34, %cst_31 {dimension_numbers = #tpu.dot_dimension_numbers<[1], [0], [0], [1], [0, 0, 1, 1], [], []>} : vector<128x64xf32>, vector<64x64xf32>, vector<128x64xf32> -> vector<128x64xf32>
    %c0_32 = arith.constant 0 : index
    %c0_33 = arith.constant 0 : index
    %36 = vector.load %arg13[%c0_32, %c0_33] : memref<1x64xf32, #tpu.memory_space<vmem>>, vector<1x64xf32>
    %37 = vector.broadcast %36 : vector<1x64xf32> to vector<128x64xf32>
    %38 = arith.addf %35, %37 : vector<128x64xf32>
    %cst_34 = arith.constant 0.000000e+00 : f32
    %39 = vector.broadcast %cst_34 : f32 to vector<128x64xf32>
    %40 = arith.cmpf oge, %38, %39 : vector<128x64xf32>
    %cst_35 = arith.constant 1.000000e-01 : f32
    %41 = vector.broadcast %cst_35 : f32 to vector<128x64xf32>
    %42 = arith.mulf %41, %38 : vector<128x64xf32>
    %43 = arith.select %40, %38, %42 : vector<128x64xi1>, vector<128x64xf32>
    %c0_36 = arith.constant 0 : index
    %c0_37 = arith.constant 0 : index
    %44 = vector.load %arg14[%c0_36, %c0_37] : memref<64x32xf32, #tpu.memory_space<vmem>>, vector<64x32xf32>
    %cst_38 = arith.constant dense<0.000000e+00> : vector<128x32xf32>
    %45 = tpu.matmul %43, %44, %cst_38 {dimension_numbers = #tpu.dot_dimension_numbers<[1], [0], [0], [1], [0, 0, 1, 1], [], []>} : vector<128x64xf32>, vector<64x32xf32>, vector<128x32xf32> -> vector<128x32xf32>
    %c0_39 = arith.constant 0 : index
    %c0_40 = arith.constant 0 : index
    %46 = vector.load %arg15[%c0_39, %c0_40] : memref<1x32xf32, #tpu.memory_space<vmem>>, vector<1x32xf32>
    %47 = vector.broadcast %46 : vector<1x32xf32> to vector<128x32xf32>
    %48 = arith.addf %45, %47 : vector<128x32xf32>
    %49 = arith.mulf %48, %48 : vector<128x32xf32>
    %cst_41 = arith.constant dense<0.000000e+00> : vector<128xf32>
    %50 = vector.multi_reduction <add>, %49, %cst_41 [1] : vector<128x32xf32> to vector<128xf32>
    %51 = vector.shape_cast %50 : vector<128xf32> to vector<128x1xf32>
    %52 = math.rsqrt %51 : vector<128x1xf32>
    %53 = vector.broadcast %52 : vector<128x1xf32> to vector<128x32xf32>
    %54 = arith.mulf %48, %53 : vector<128x32xf32>
    %c0_42 = arith.constant 0 : index
    %c0_43 = arith.constant 0 : index
    %55 = vector.load %arg16[%c0_42, %c0_43] : memref<32x128xf32, #tpu.memory_space<vmem>>, vector<32x128xf32>
    %cst_44 = arith.constant dense<0.000000e+00> : vector<128x128xf32>
    %56 = tpu.matmul %54, %55, %cst_44 {dimension_numbers = #tpu.dot_dimension_numbers<[1], [0], [0], [1], [0, 0, 1, 1], [], []>} : vector<128x32xf32>, vector<32x128xf32>, vector<128x128xf32> -> vector<128x128xf32>
    %c0_45 = arith.constant 0 : index
    %c0_46 = arith.constant 0 : index
    %57 = vector.load %arg17[%c0_45, %c0_46] : memref<1x128xf32, #tpu.memory_space<vmem>>, vector<1x128xf32>
    %58 = vector.broadcast %57 : vector<1x128xf32> to vector<128x128xf32>
    %59 = arith.addf %56, %58 : vector<128x128xf32>
    %c0_47 = arith.constant 0 : index
    %c0_48 = arith.constant 0 : index
    %60 = vector.load %arg18[%c0_47, %c0_48] : memref<128x128xf32, #tpu.memory_space<vmem>>, vector<128x128xf32>
    tpu.vector_store %arg18[%c0_47, %c0_48], %59 {strides = array<i32>} : memref<128x128xf32, #tpu.memory_space<vmem>>, vector<128x128xf32>,
    return
  }
  func.func @transform_0(%arg0: i32) -> (i32, i32) {
    %c0_i32 = arith.constant 0 : i32
    %c0_i32_0 = arith.constant 0 : i32
    return %arg0, %c0_i32 : i32, i32
  }
  func.func @transform_1(%arg0: i32) -> (i32, i32) {
    %c0_i32 = arith.constant 0 : i32
    %c0_i32_0 = arith.constant 0 : i32
    %c0_i32_1 = arith.constant 0 : i32
    return %c0_i32, %c0_i32_0 : i32, i32
  }
  func.func @transform_2(%arg0: i32) -> (i32, i32) {
    %c0_i32 = arith.constant 0 : i32
    %c0_i32_0 = arith.constant 0 : i32
    %c0_i32_1 = arith.constant 0 : i32
    return %c0_i32, %c0_i32_0 : i32, i32
  }
  func.func @transform_3(%arg0: i32) -> (i32, i32) {
    %c0_i32 = arith.constant 0 : i32
    %c0_i32_0 = arith.constant 0 : i32
    %c0_i32_1 = arith.constant 0 : i32
    return %c0_i32, %c0_i32_0 : i32, i32
  }
  func.func @transform_4(%arg0: i32) -> (i32, i32) {
    %c0_i32 = arith.constant 0 : i32
    %c0_i32_0 = arith.constant 0 : i32
    %c0_i32_1 = arith.constant 0 : i32
    return %c0_i32, %c0_i32_0 : i32, i32
  }
  func.func @transform_5(%arg0: i32) -> (i32, i32) {
    %c0_i32 = arith.constant 0 : i32
    %c0_i32_0 = arith.constant 0 : i32
    %c0_i32_1 = arith.constant 0 : i32
    return %c0_i32, %c0_i32_0 : i32, i32
  }
  func.func @transform_6(%arg0: i32) -> (i32, i32) {
    %c0_i32 = arith.constant 0 : i32
    %c0_i32_0 = arith.constant 0 : i32
    %c0_i32_1 = arith.constant 0 : i32
    return %c0_i32, %c0_i32_0 : i32, i32
  }
  func.func @transform_7(%arg0: i32) -> (i32, i32) {
    %c0_i32 = arith.constant 0 : i32
    %c0_i32_0 = arith.constant 0 : i32
    %c0_i32_1 = arith.constant 0 : i32
    return %c0_i32, %c0_i32_0 : i32, i32
  }
  func.func @transform_8(%arg0: i32) -> (i32, i32) {
    %c0_i32 = arith.constant 0 : i32
    %c0_i32_0 = arith.constant 0 : i32
    %c0_i32_1 = arith.constant 0 : i32
    return %c0_i32, %c0_i32_0 : i32, i32
  }
  func.func @transform_9(%arg0: i32) -> (i32, i32) {
    %c0_i32 = arith.constant 0 : i32
    %c0_i32_0 = arith.constant 0 : i32
    %c0_i32_1 = arith.constant 0 : i32
    return %c0_i32, %c0_i32_0 : i32, i32
  }
  func.func @transform_10(%arg0: i32) -> (i32, i32) {
    %c0_i32 = arith.constant 0 : i32
    %c0_i32_0 = arith.constant 0 : i32
    %c0_i32_1 = arith.constant 0 : i32
    return %c0_i32, %c0_i32_0 : i32, i32
  }
  func.func @transform_11(%arg0: i32) -> (i32, i32) {
    %c0_i32 = arith.constant 0 : i32
    %c0_i32_0 = arith.constant 0 : i32
    %c0_i32_1 = arith.constant 0 : i32
    return %c0_i32, %c0_i32_0 : i32, i32
  }
  func.func @transform_12(%arg0: i32) -> (i32, i32) {
    %c0_i32 = arith.constant 0 : i32
    %c0_i32_0 = arith.constant 0 : i32
    %c0_i32_1 = arith.constant 0 : i32
    return %c0_i32, %c0_i32_0 : i32, i32
  }
  func.func @transform_13(%arg0: i32) -> (i32, i32) {
    %c0_i32 = arith.constant 0 : i32
    %c0_i32_0 = arith.constant 0 : i32
    %c0_i32_1 = arith.constant 0 : i32
    return %c0_i32, %c0_i32_0 : i32, i32
  }
  func.func @transform_14(%arg0: i32) -> (i32, i32) {
    %c0_i32 = arith.constant 0 : i32
    %c0_i32_0 = arith.constant 0 : i32
    %c0_i32_1 = arith.constant 0 : i32
    return %c0_i32, %c0_i32_0 : i32, i32
  }
  func.func @transform_15(%arg0: i32) -> (i32, i32) {
    %c0_i32 = arith.constant 0 : i32
    %c0_i32_0 = arith.constant 0 : i32
    %c0_i32_1 = arith.constant 0 : i32
    return %c0_i32, %c0_i32_0 : i32, i32
  }
  func.func @transform_16(%arg0: i32) -> (i32, i32) {
    %c0_i32 = arith.constant 0 : i32
    %c0_i32_0 = arith.constant 0 : i32
    %c0_i32_1 = arith.constant 0 : i32
    return %c0_i32, %c0_i32_0 : i32, i32
  }
  func.func @transform_17(%arg0: i32) -> (i32, i32) {
    %c0_i32 = arith.constant 0 : i32
    %c0_i32_0 = arith.constant 0 : i32
    return %arg0, %c0_i32 : i32, i32
  }
}

</mosaic_0001>

<llo_original>
// kernel: tpu_custom_call.1
$region0: #{tpu_custom_call.1}
  #allocation0 [shape = 'u32[]', space=smem, size = 0x4, offset = 0x4, fixed_abs, tag = 'smem constant byte address 0x4 - core index']
  #allocation1 [shape = 'u32[72,128]{1,0:T(1,128)}', space=vmem, size = 0x9000, scoped, tag = 'internal scratch']
  %s0 = inlined_call_operand.vmem [shape: f32[128,896], index: 0, kind: input, shape index: {}]
  %s1 = inlined_call_operand.vmem [shape: f32[896,64], index: 1, kind: input, shape index: {}]
  %s2 = inlined_call_operand.vmem [shape: f32[1,64], index: 2, kind: input, shape index: {}]
  %s3 = inlined_call_operand.vmem [shape: f32[64,64], index: 3, kind: input, shape index: {}]
  %s4 = inlined_call_operand.vmem [shape: f32[1,64], index: 4, kind: input, shape index: {}]
  %s5 = inlined_call_operand.vmem [shape: f32[64,64], index: 5, kind: input, shape index: {}]
  %s6 = inlined_call_operand.vmem [shape: f32[1,64], index: 6, kind: input, shape index: {}]
  %s7 = inlined_call_operand.vmem [shape: f32[64,64], index: 7, kind: input, shape index: {}]
  %s8 = inlined_call_operand.vmem [shape: f32[1,64], index: 8, kind: input, shape index: {}]
  %s9 = inlined_call_operand.vmem [shape: f32[64,64], index: 9, kind: input, shape index: {}]
  %s10 = inlined_call_operand.vmem [shape: f32[1,64], index: 10, kind: input, shape index: {}]
  %s11 = inlined_call_operand.vmem [shape: f32[64,64], index: 11, kind: input, shape index: {}]
  %s12 = inlined_call_operand.vmem [shape: f32[1,64], index: 12, kind: input, shape index: {}]
  %s13 = inlined_call_operand.vmem [shape: f32[64,32], index: 13, kind: input, shape index: {}]
  %s14 = inlined_call_operand.vmem [shape: f32[1,32], index: 14, kind: input, shape index: {}]
  %s15 = inlined_call_operand.vmem [shape: f32[32,128], index: 15, kind: input, shape index: {}]
  %s16 = inlined_call_operand.vmem [shape: f32[1,128], index: 16, kind: input, shape index: {}]
  %s17 = inlined_call_operand.hbm [shape: f32[128,128], index: 17, kind: output, shape index: {}]
  %s18 = sld [smem:[#allocation0]]
  $region78: #{tpu_custom_call.1} parent=0
    _
  %s20 = ssub.s32 1, %s18
  %s21 = scalar_select 0, %s20, %s18
  $region1: #{tpu_custom_call.1} parent=0
    #allocation2 [shape = 'u8[65536]{0}', space=vmem, size = 0x10000, scoped, tag = 'output window, operand 0, single buffered']
    #allocation3 [shape = 's32[1]{0}', space=sflag, size = 0x4, scoped, tag = 'scoped memory for tpu_custom_call.1']
    %22 = vsyncpa [#allocation3], 0
    // Predicated region
    $region2: #{tpu_custom_call.1} parent=1 // pred_check
      _
    $region3: #{tpu_custom_call.1} parent=1 // pred_check_branch
      %24 = sbr.rel (0) target = $region5
    $region4: #{tpu_custom_call.1} parent=1 // pred_region
      _
    $region5: #{tpu_custom_call.1} parent=1 // pred_fallthru
      _
    // Predicated region
    $region6: #{tpu_custom_call.1} parent=1 // pred_check
      _
    $region7: #{tpu_custom_call.1} parent=1 // pred_check_branch
      %26 = sbr.rel (0) target = $region9
    $region8: #{tpu_custom_call.1} parent=1 // pred_region
      _
    $region9: #{tpu_custom_call.1} parent=1 // pred_fallthru
      _
    // Predicated region
    $region10: #{tpu_custom_call.1} parent=1 // pred_check
      _
    $region11: #{tpu_custom_call.1} parent=1 // pred_check_branch
      %28 = sbr.rel (0) target = $region13
    $region12: #{tpu_custom_call.1} parent=1 // pred_region
      _
    $region13: #{tpu_custom_call.1} parent=1 // pred_fallthru
      _
    // Predicated region
    $region14: #{tpu_custom_call.1} parent=1 // pred_check
      _
    $region15: #{tpu_custom_call.1} parent=1 // pred_check_branch
      %30 = sbr.rel (0) target = $region17
    $region16: #{tpu_custom_call.1} parent=1 // pred_region
      _
    $region17: #{tpu_custom_call.1} parent=1 // pred_fallthru
      _
    // Predicated region
    $region18: #{tpu_custom_call.1} parent=1 // pred_check
      _
    $region19: #{tpu_custom_call.1} parent=1 // pred_check_branch
      %32 = sbr.rel (0) target = $region21
    $region20: #{tpu_custom_call.1} parent=1 // pred_region
      _
    $region21: #{tpu_custom_call.1} parent=1 // pred_fallthru
      _
    // Predicated region
    $region22: #{tpu_custom_call.1} parent=1 // pred_check
      _
    $region23: #{tpu_custom_call.1} parent=1 // pred_check_branch
      %34 = sbr.rel (0) target = $region25
    $region24: #{tpu_custom_call.1} parent=1 // pred_region
      _
    $region25: #{tpu_custom_call.1} parent=1 // pred_fallthru
      _
    // Predicated region
    $region26: #{tpu_custom_call.1} parent=1 // pred_check
      _
    $region27: #{tpu_custom_call.1} parent=1 // pred_check_branch
      %36 = sbr.rel (0) target = $region29
    $region28: #{tpu_custom_call.1} parent=1 // pred_region
      _
    $region29: #{tpu_custom_call.1} parent=1 // pred_fallthru
      _
    // Predicated region
    $region30: #{tpu_custom_call.1} parent=1 // pred_check
      _
    $region31: #{tpu_custom_call.1} parent=1 // pred_check_branch
      %38 = sbr.rel (0) target = $region33
    $region32: #{tpu_custom_call.1} parent=1 // pred_region
      _
    $region33: #{tpu_custom_call.1} parent=1 // pred_fallthru
      _
    // Predicated region
    $region34: #{tpu_custom_call.1} parent=1 // pred_check
      _
    $region35: #{tpu_custom_call.1} parent=1 // pred_check_branch
      %40 = sbr.rel (0) target = $region37
    $region36: #{tpu_custom_call.1} parent=1 // pred_region
      _
    $region37: #{tpu_custom_call.1} parent=1 // pred_fallthru
      _
    // Predicated region
    $region38: #{tpu_custom_call.1} parent=1 // pred_check
      _
    $region39: #{tpu_custom_call.1} parent=1 // pred_check_branch
      %42 = sbr.rel (0) target = $region41
    $region40: #{tpu_custom_call.1} parent=1 // pred_region
      _
    $region41: #{tpu_custom_call.1} parent=1 // pred_fallthru
      _
    // Predicated region
    $region42: #{tpu_custom_call.1} parent=1 // pred_check
      _
    $region43: #{tpu_custom_call.1} parent=1 // pred_check_branch
      %44 = sbr.rel (0) target = $region45
    $region44: #{tpu_custom_call.1} parent=1 // pred_region
      _
    $region45: #{tpu_custom_call.1} parent=1 // pred_fallthru
      _
    // Predicated region
    $region46: #{tpu_custom_call.1} parent=1 // pred_check
      _
    $region47: #{tpu_custom_call.1} parent=1 // pred_check_branch
      %46 = sbr.rel (0) target = $region49
    $region48: #{tpu_custom_call.1} parent=1 // pred_region
      _
    $region49: #{tpu_custom_call.1} parent=1 // pred_fallthru
      _
    // Predicated region
    $region50: #{tpu_custom_call.1} parent=1 // pred_check
      _
    $region51: #{tpu_custom_call.1} parent=1 // pred_check_branch
      %48 = sbr.rel (0) target = $region53
    $region52: #{tpu_custom_call.1} parent=1 // pred_region
      _
    $region53: #{tpu_custom_call.1} parent=1 // pred_fallthru
      _
    // Predicated region
    $region54: #{tpu_custom_call.1} parent=1 // pred_check
      _
    $region55: #{tpu_custom_call.1} parent=1 // pred_check_branch
      %50 = sbr.rel (0) target = $region57
    $region56: #{tpu_custom_call.1} parent=1 // pred_region
      _
    $region57: #{tpu_custom_call.1} parent=1 // pred_fallthru
      _
    // Predicated region
    $region58: #{tpu_custom_call.1} parent=1 // pred_check
      _
    $region59: #{tpu_custom_call.1} parent=1 // pred_check_branch
      %52 = sbr.rel (0) target = $region61
    $region60: #{tpu_custom_call.1} parent=1 // pred_region
      _
    $region61: #{tpu_custom_call.1} parent=1 // pred_fallthru
      _
    // Predicated region
    $region62: #{tpu_custom_call.1} parent=1 // pred_check
      _
    $region63: #{tpu_custom_call.1} parent=1 // pred_check_branch
      %54 = sbr.rel (0) target = $region65
    $region64: #{tpu_custom_call.1} parent=1 // pred_region
      _
    $region65: #{tpu_custom_call.1} parent=1 // pred_fallthru
      _
    // Predicated region
    $region66: #{tpu_custom_call.1} parent=1 // pred_check
      _
    $region67: #{tpu_custom_call.1} parent=1 // pred_check_branch
      %56 = sbr.rel (0) target = $region69
    $region68: #{tpu_custom_call.1} parent=1 // pred_region
      _
    $region69: #{tpu_custom_call.1} parent=1 // pred_fallthru
      _
    %v57 = vld [vmem:[%s0] sm:$0xff]
    %v58 = vld [vmem:[%s0 + $0x8] sm:$0xff]
    %v59 = vld [vmem:[%s0 + $0x10] sm:$0xff]
    %v60 = vld [vmem:[%s0 + $0x18] sm:$0xff]
    %v61 = vld [vmem:[%s0 + $0x20] sm:$0xff]
    %v62 = vld [vmem:[%s0 + $0x28] sm:$0xff]
    %v63 = vld [vmem:[%s0 + $0x30] sm:$0xff]
    %v64 = vld [vmem:[%s0 + $0x38] sm:$0xff]
    %v65 = vld [vmem:[%s0 + $0x40] sm:$0xff]
    %v66 = vld [vmem:[%s0 + $0x48] sm:$0xff]
    %v67 = vld [vmem:[%s0 + $0x50] sm:$0xff]
    %v68 = vld [vmem:[%s0 + $0x58] sm:$0xff]
    %v69 = vld [vmem:[%s0 + $0x60] sm:$0xff]
    %v70 = vld [vmem:[%s0 + $0x68] sm:$0xff]
    %v71 = vld [vmem:[%s0 + $0x70] sm:$0xff]
    %v72 = vld [vmem:[%s0 + $0x78] sm:$0xff]
    %v73 = vld [vmem:[%s0 + $0x80] sm:$0xff]
    %v74 = vld [vmem:[%s0 + $0x88] sm:$0xff]
    %v75 = vld [vmem:[%s0 + $0x90] sm:$0xff]
    %v76 = vld [vmem:[%s0 + $0x98] sm:$0xff]
    %v77 = vld [vmem:[%s0 + $0xa0] sm:$0xff]
    %v78 = vld [vmem:[%s0 + $0xa8] sm:$0xff]
    %v79 = vld [vmem:[%s0 + $0xb0] sm:$0xff]
    %v80 = vld [vmem:[%s0 + $0xb8] sm:$0xff]
    %v81 = vld [vmem:[%s0 + $0xc0] sm:$0xff]
    %v82 = vld [vmem:[%s0 + $0xc8] sm:$0xff]
    %v83 = vld [vmem:[%s0 + $0xd0] sm:$0xff]
    %v84 = vld [vmem:[%s0 + $0xd8] sm:$0xff]
    %v85 = vld [vmem:[%s0 + $0xe0] sm:$0xff]
    %v86 = vld [vmem:[%s0 + $0xe8] sm:$0xff]
    %v87 = vld [vmem:[%s0 + $0xf0] sm:$0xff]
    %v88 = vld [vmem:[%s0 + $0xf8] sm:$0xff]
    %v89 = vld [vmem:[%s0 + $0x100] sm:$0xff]
    %v90 = vld [vmem:[%s0 + $0x108] sm:$0xff]
    %v91 = vld [vmem:[%s0 + $0x110] sm:$0xff]
    %v92 = vld [vmem:[%s0 + $0x118] sm:$0xff]
    %v93 = vld [vmem:[%s0 + $0x120] sm:$0xff]
    %v94 = vld [vmem:[%s0 + $0x128] sm:$0xff]
    %v95 = vld [vmem:[%s0 + $0x130] sm:$0xff]
    %v96 = vld [vmem:[%s0 + $0x138] sm:$0xff]
    %v97 = vld [vmem:[%s0 + $0x140] sm:$0xff]
    %v98 = vld [vmem:[%s0 + $0x148] sm:$0xff]
    %v99 = vld [vmem:[%s0 + $0x150] sm:$0xff]
    %v100 = vld [vmem:[%s0 + $0x158] sm:$0xff]
    %v101 = vld [vmem:[%s0 + $0x160] sm:$0xff]
    %v102 = vld [vmem:[%s0 + $0x168] sm:$0xff]
    %v103 = vld [vmem:[%s0 + $0x170] sm:$0xff]
    %v104 = vld [vmem:[%s0 + $0x178] sm:$0xff]
    %v105 = vld [vmem:[%s0 + $0x180] sm:$0xff]
    %v106 = vld [vmem:[%s0 + $0x188] sm:$0xff]
    %v107 = vld [vmem:[%s0 + $0x190] sm:$0xff]
    %v108 = vld [vmem:[%s0 + $0x198] sm:$0xff]
    %v109 = vld [vmem:[%s0 + $0x1a0] sm:$0xff]
    %v110 = vld [vmem:[%s0 + $0x1a8] sm:$0xff]
    %v111 = vld [vmem:[%s0 + $0x1b0] sm:$0xff]
    %v112 = vld [vmem:[%s0 + $0x1b8] sm:$0xff]
    %v113 = vld [vmem:[%s0 + $0x1c0] sm:$0xff]
    %v114 = vld [vmem:[%s0 + $0x1c8] sm:$0xff]
    %v115 = vld [vmem:[%s0 + $0x1d0] sm:$0xff]
    %v116 = vld [vmem:[%s0 + $0x1d8] sm:$0xff]
    %v117 = vld [vmem:[%s0 + $0x1e0] sm:$0xff]
    %v118 = vld [vmem:[%s0 + $0x1e8] sm:$0xff]
    %v119 = vld [vmem:[%s0 + $0x1f0] sm:$0xff]
    %v120 = vld [vmem:[%s0 + $0x1f8] sm:$0xff]
    %v121 = vld [vmem:[%s0 + $0x200] sm:$0xff]
    %v122 = vld [vmem:[%s0 + $0x208] sm:$0xff]
    %v123 = vld [vmem:[%s0 + $0x210] sm:$0xff]
    %v124 = vld [vmem:[%s0 + $0x218] sm:$0xff]
    %v125 = vld [vmem:[%s0 + $0x220] sm:$0xff]
    %v126 = vld [vmem:[%s0 + $0x228] sm:$0xff]
    %v127 = vld [vmem:[%s0 + $0x230] sm:$0xff]
    %v128 = vld [vmem:[%s0 + $0x238] sm:$0xff]
    %v129 = vld [vmem:[%s0 + $0x240] sm:$0xff]
    %v130 = vld [vmem:[%s0 + $0x248] sm:$0xff]
    %v131 = vld [vmem:[%s0 + $0x250] sm:$0xff]
    %v132 = vld [vmem:[%s0 + $0x258] sm:$0xff]
    %v133 = vld [vmem:[%s0 + $0x260] sm:$0xff]
    %v134 = vld [vmem:[%s0 + $0x268] sm:$0xff]
    %v135 = vld [vmem:[%s0 + $0x270] sm:$0xff]
    %v136 = vld [vmem:[%s0 + $0x278] sm:$0xff]
    %v137 = vld [vmem:[%s0 + $0x280] sm:$0xff]
    %v138 = vld [vmem:[%s0 + $0x288] sm:$0xff]
    %v139 = vld [vmem:[%s0 + $0x290] sm:$0xff]
    %v140 = vld [vmem:[%s0 + $0x298] sm:$0xff]
    %v141 = vld [vmem:[%s0 + $0x2a0] sm:$0xff]
    %v142 = vld [vmem:[%s0 + $0x2a8] sm:$0xff]
    %v143 = vld [vmem:[%s0 + $0x2b0] sm:$0xff]
    %v144 = vld [vmem:[%s0 + $0x2b8] sm:$0xff]
    %v145 = vld [vmem:[%s0 + $0x2c0] sm:$0xff]
    %v146 = vld [vmem:[%s0 + $0x2c8] sm:$0xff]
    %v147 = vld [vmem:[%s0 + $0x2d0] sm:$0xff]
    %v148 = vld [vmem:[%s0 + $0x2d8] sm:$0xff]
    %v149 = vld [vmem:[%s0 + $0x2e0] sm:$0xff]
    %v150 = vld [vmem:[%s0 + $0x2e8] sm:$0xff]
    %v151 = vld [vmem:[%s0 + $0x2f0] sm:$0xff]
    %v152 = vld [vmem:[%s0 + $0x2f8] sm:$0xff]
    %v153 = vld [vmem:[%s0 + $0x300] sm:$0xff]
    %v154 = vld [vmem:[%s0 + $0x308] sm:$0xff]
    %v155 = vld [vmem:[%s0 + $0x310] sm:$0xff]
    %v156 = vld [vmem:[%s0 + $0x318] sm:$0xff]
    %v157 = vld [vmem:[%s0 + $0x320] sm:$0xff]
    %v158 = vld [vmem:[%s0 + $0x328] sm:$0xff]
    %v159 = vld [vmem:[%s0 + $0x330] sm:$0xff]
    %v160 = vld [vmem:[%s0 + $0x338] sm:$0xff]
    %v161 = vld [vmem:[%s0 + $0x340] sm:$0xff]
    %v162 = vld [vmem:[%s0 + $0x348] sm:$0xff]
    %v163 = vld [vmem:[%s0 + $0x350] sm:$0xff]
    %v164 = vld [vmem:[%s0 + $0x358] sm:$0xff]
    %v165 = vld [vmem:[%s0 + $0x360] sm:$0xff]
    %v166 = vld [vmem:[%s0 + $0x368] sm:$0xff]
    %v167 = vld [vmem:[%s0 + $0x370] sm:$0xff]
    %v168 = vld [vmem:[%s0 + $0x378] sm:$0xff]
    %v169 = vld [vmem:[%s1] sm:$0xff]
    %v170 = vld [vmem:[%s1 + $0x8] sm:$0xff]
    %v171 = vld [vmem:[%s1 + $0x10] sm:$0xff]
    %v172 = vld [vmem:[%s1 + $0x18] sm:$0xff]
    %v173 = vld [vmem:[%s1 + $0x20] sm:$0xff]
    %v174 = vld [vmem:[%s1 + $0x28] sm:$0xff]
    %v175 = vld [vmem:[%s1 + $0x30] sm:$0xff]
    %v176 = vld [vmem:[%s1 + $0x38] sm:$0xff]
    %v177 = vld [vmem:[%s1 + $0x40] sm:$0xff]
    %v178 = vld [vmem:[%s1 + $0x48] sm:$0xff]
    %v179 = vld [vmem:[%s1 + $0x50] sm:$0xff]
    %v180 = vld [vmem:[%s1 + $0x58] sm:$0xff]
    %v181 = vld [vmem:[%s1 + $0x60] sm:$0xff]
    %v182 = vld [vmem:[%s1 + $0x68] sm:$0xff]
    %v183 = vld [vmem:[%s1 + $0x70] sm:$0xff]
    %v184 = vld [vmem:[%s1 + $0x78] sm:$0xff]
    %v185 = vld [vmem:[%s1 + $0x80] sm:$0xff]
    %v186 = vld [vmem:[%s1 + $0x88] sm:$0xff]
    %v187 = vld [vmem:[%s1 + $0x90] sm:$0xff]
    %v188 = vld [vmem:[%s1 + $0x98] sm:$0xff]
    %v189 = vld [vmem:[%s1 + $0xa0] sm:$0xff]
    %v190 = vld [vmem:[%s1 + $0xa8] sm:$0xff]
    %v191 = vld [vmem:[%s1 + $0xb0] sm:$0xff]
    %v192 = vld [vmem:[%s1 + $0xb8] sm:$0xff]
    %v193 = vld [vmem:[%s1 + $0xc0] sm:$0xff]
    %v194 = vld [vmem:[%s1 + $0xc8] sm:$0xff]
    %v195 = vld [vmem:[%s1 + $0xd0] sm:$0xff]
    %v196 = vld [vmem:[%s1 + $0xd8] sm:$0xff]
    %v197 = vld [vmem:[%s1 + $0xe0] sm:$0xff]
    %v198 = vld [vmem:[%s1 + $0xe8] sm:$0xff]
    %v199 = vld [vmem:[%s1 + $0xf0] sm:$0xff]
    %v200 = vld [vmem:[%s1 + $0xf8] sm:$0xff]
    %v201 = vld [vmem:[%s1 + $0x100] sm:$0xff]
    %v202 = vld [vmem:[%s1 + $0x108] sm:$0xff]
    %v203 = vld [vmem:[%s1 + $0x110] sm:$0xff]
    %v204 = vld [vmem:[%s1 + $0x118] sm:$0xff]
    %v205 = vld [vmem:[%s1 + $0x120] sm:$0xff]
    %v206 = vld [vmem:[%s1 + $0x128] sm:$0xff]
    %v207 = vld [vmem:[%s1 + $0x130] sm:$0xff]
    %v208 = vld [vmem:[%s1 + $0x138] sm:$0xff]
    %v209 = vld [vmem:[%s1 + $0x140] sm:$0xff]
    %v210 = vld [vmem:[%s1 + $0x148] sm:$0xff]
    %v211 = vld [vmem:[%s1 + $0x150] sm:$0xff]
    %v212 = vld [vmem:[%s1 + $0x158] sm:$0xff]
    %v213 = vld [vmem:[%s1 + $0x160] sm:$0xff]
    %v214 = vld [vmem:[%s1 + $0x168] sm:$0xff]
    %v215 = vld [vmem:[%s1 + $0x170] sm:$0xff]
    %v216 = vld [vmem:[%s1 + $0x178] sm:$0xff]
    %v217 = vld [vmem:[%s1 + $0x180] sm:$0xff]
    %v218 = vld [vmem:[%s1 + $0x188] sm:$0xff]
    %v219 = vld [vmem:[%s1 + $0x190] sm:$0xff]
    %v220 = vld [vmem:[%s1 + $0x198] sm:$0xff]
    %v221 = vld [vmem:[%s1 + $0x1a0] sm:$0xff]
    %v222 = vld [vmem:[%s1 + $0x1a8] sm:$0xff]
    %v223 = vld [vmem:[%s1 + $0x1b0] sm:$0xff]
    %v224 = vld [vmem:[%s1 + $0x1b8] sm:$0xff]
    %v225 = vld [vmem:[%s1 + $0x1c0] sm:$0xff]
    %v226 = vld [vmem:[%s1 + $0x1c8] sm:$0xff]
    %v227 = vld [vmem:[%s1 + $0x1d0] sm:$0xff]
    %v228 = vld [vmem:[%s1 + $0x1d8] sm:$0xff]
    %v229 = vld [vmem:[%s1 + $0x1e0] sm:$0xff]
    %v230 = vld [vmem:[%s1 + $0x1e8] sm:$0xff]
    %v231 = vld [vmem:[%s1 + $0x1f0] sm:$0xff]
    %v232 = vld [vmem:[%s1 + $0x1f8] sm:$0xff]
    %v233 = vld [vmem:[%s1 + $0x200] sm:$0xff]
    %v234 = vld [vmem:[%s1 + $0x208] sm:$0xff]
    %v235 = vld [vmem:[%s1 + $0x210] sm:$0xff]
    %v236 = vld [vmem:[%s1 + $0x218] sm:$0xff]
    %v237 = vld [vmem:[%s1 + $0x220] sm:$0xff]
    %v238 = vld [vmem:[%s1 + $0x228] sm:$0xff]
    %v239 = vld [vmem:[%s1 + $0x230] sm:$0xff]
    %v240 = vld [vmem:[%s1 + $0x238] sm:$0xff]
    %v241 = vld [vmem:[%s1 + $0x240] sm:$0xff]
    %v242 = vld [vmem:[%s1 + $0x248] sm:$0xff]
    %v243 = vld [vmem:[%s1 + $0x250] sm:$0xff]
    %v244 = vld [vmem:[%s1 + $0x258] sm:$0xff]
    %v245 = vld [vmem:[%s1 + $0x260] sm:$0xff]
    %v246 = vld [vmem:[%s1 + $0x268] sm:$0xff]
    %v247 = vld [vmem:[%s1 + $0x270] sm:$0xff]
    %v248 = vld [vmem:[%s1 + $0x278] sm:$0xff]
    %v249 = vld [vmem:[%s1 + $0x280] sm:$0xff]
    %v250 = vld [vmem:[%s1 + $0x288] sm:$0xff]
    %v251 = vld [vmem:[%s1 + $0x290] sm:$0xff]
    %v252 = vld [vmem:[%s1 + $0x298] sm:$0xff]
    %v253 = vld [vmem:[%s1 + $0x2a0] sm:$0xff]
    %v254 = vld [vmem:[%s1 + $0x2a8] sm:$0xff]
    %v255 = vld [vmem:[%s1 + $0x2b0] sm:$0xff]
    %v256 = vld [vmem:[%s1 + $0x2b8] sm:$0xff]
    %v257 = vld [vmem:[%s1 + $0x2c0] sm:$0xff]
    %v258 = vld [vmem:[%s1 + $0x2c8] sm:$0xff]
    %v259 = vld [vmem:[%s1 + $0x2d0] sm:$0xff]
    %v260 = vld [vmem:[%s1 + $0x2d8] sm:$0xff]
    %v261 = vld [vmem:[%s1 + $0x2e0] sm:$0xff]
    %v262 = vld [vmem:[%s1 + $0x2e8] sm:$0xff]
    %v263 = vld [vmem:[%s1 + $0x2f0] sm:$0xff]
    %v264 = vld [vmem:[%s1 + $0x2f8] sm:$0xff]
    %v265 = vld [vmem:[%s1 + $0x300] sm:$0xff]
    %v266 = vld [vmem:[%s1 + $0x308] sm:$0xff]
    %v267 = vld [vmem:[%s1 + $0x310] sm:$0xff]
    %v268 = vld [vmem:[%s1 + $0x318] sm:$0xff]
    %v269 = vld [vmem:[%s1 + $0x320] sm:$0xff]
    %v270 = vld [vmem:[%s1 + $0x328] sm:$0xff]
    %v271 = vld [vmem:[%s1 + $0x330] sm:$0xff]
    %v272 = vld [vmem:[%s1 + $0x338] sm:$0xff]
    %v273 = vld [vmem:[%s1 + $0x340] sm:$0xff]
    %v274 = vld [vmem:[%s1 + $0x348] sm:$0xff]
    %v275 = vld [vmem:[%s1 + $0x350] sm:$0xff]
    %v276 = vld [vmem:[%s1 + $0x358] sm:$0xff]
    %v277 = vld [vmem:[%s1 + $0x360] sm:$0xff]
    %v278 = vld [vmem:[%s1 + $0x368] sm:$0xff]
    %v279 = vld [vmem:[%s1 + $0x370] sm:$0xff]
    %v280 = vld [vmem:[%s1 + $0x378] sm:$0xff]
    %v281 = vld [vmem:[%s2] sm:$0x1]
    %v283 = vperm.slane %v281, 0
    %285 = vmatpush.msra.mxu0 %v184
    %286 = vmatpush.msra.mxu0 %v183
    %287 = vmatpush.msra.mxu0 %v182
    %288 = vmatpush.msra.mxu0 %v181
    %289 = vmatpush.msra.mxu0 %v180
    %290 = vmatpush.msra.mxu0 %v179
    %291 = vmatpush.msra.mxu0 %v178
    %292 = vmatpush.msra.mxu0 %v177
    %293 = vmatpush.msra.mxu0 %v176
    %294 = vmatpush.msra.mxu0 %v175
    %295 = vmatpush.msra.mxu0 %v174
    %296 = vmatpush.msra.mxu0 %v173
    %297 = vmatpush.msra.mxu0 %v172
    %298 = vmatpush.msra.mxu0 %v171
    %299 = vmatpush.msra.mxu0 %v170
    %300 = vmatpush.msra.mxu0 %v169
    %301 = vmatmul.f32.gmra.mxu0 %v57
    %v302 = vpop.f32.mrf.mxu0
    %v303 = vadd.f32 %v283, %v302
    %304 = vmatmul.f32.gmra.mxu0 %v64
    %v305 = vpop.f32.mrf.mxu0
    %v306 = vadd.f32 %v283, %v305
    %307 = vmatmul.f32.gmra.mxu0 %v71
    %v308 = vpop.f32.mrf.mxu0
    %v309 = vadd.f32 %v283, %v308
    %310 = vmatmul.f32.gmra.mxu0 %v78
    %v311 = vpop.f32.mrf.mxu0
    %v312 = vadd.f32 %v283, %v311
    %313 = vmatmul.f32.gmra.mxu0 %v85
    %v314 = vpop.f32.mrf.mxu0
    %v315 = vadd.f32 %v283, %v314
    %316 = vmatmul.f32.gmra.mxu0 %v92
    %v317 = vpop.f32.mrf.mxu0
    %v318 = vadd.f32 %v283, %v317
    %319 = vmatmul.f32.gmra.mxu0 %v99
    %v320 = vpop.f32.mrf.mxu0
    %v321 = vadd.f32 %v283, %v320
    %322 = vmatmul.f32.gmra.mxu0 %v106
    %v323 = vpop.f32.mrf.mxu0
    %v324 = vadd.f32 %v283, %v323
    %325 = vmatmul.f32.gmra.mxu0 %v113
    %v326 = vpop.f32.mrf.mxu0
    %v327 = vadd.f32 %v283, %v326
    %328 = vmatmul.f32.gmra.mxu0 %v120
    %v329 = vpop.f32.mrf.mxu0
    %v330 = vadd.f32 %v283, %v329
    %331 = vmatmul.f32.gmra.mxu0 %v127
    %v332 = vpop.f32.mrf.mxu0
    %v333 = vadd.f32 %v283, %v332
    %334 = vmatmul.f32.gmra.mxu0 %v134
    %v335 = vpop.f32.mrf.mxu0
    %v336 = vadd.f32 %v283, %v335
    %337 = vmatmul.f32.gmra.mxu0 %v141
    %v338 = vpop.f32.mrf.mxu0
    %v339 = vadd.f32 %v283, %v338
    %340 = vmatmul.f32.gmra.mxu0 %v148
    %v341 = vpop.f32.mrf.mxu0
    %v342 = vadd.f32 %v283, %v341
    %343 = vmatmul.f32.gmra.mxu0 %v155
    %v344 = vpop.f32.mrf.mxu0
    %v345 = vadd.f32 %v283, %v344
    %346 = vmatmul.f32.gmra.mxu0 %v162
    %v347 = vpop.f32.mrf.mxu0
    %v348 = vadd.f32 %v283, %v347
    %349 = vdwg.mxu0
    %350 = vmatpush.msra.mxu0 %v200
    %351 = vmatpush.msra.mxu0 %v199
    %352 = vmatpush.msra.mxu0 %v198
    %353 = vmatpush.msra.mxu0 %v197
    %354 = vmatpush.msra.mxu0 %v196
    %355 = vmatpush.msra.mxu0 %v195
    %356 = vmatpush.msra.mxu0 %v194
    %357 = vmatpush.msra.mxu0 %v193
    %358 = vmatpush.msra.mxu0 %v192
    %359 = vmatpush.msra.mxu0 %v191
    %360 = vmatpush.msra.mxu0 %v190
    %361 = vmatpush.msra.mxu0 %v189
    %362 = vmatpush.msra.mxu0 %v188
    %363 = vmatpush.msra.mxu0 %v187
    %364 = vmatpush.msra.mxu0 %v186
    %365 = vmatpush.msra.mxu0 %v185
    %366 = vmatmul.f32.gmra.mxu0 %v58
    %v367 = vpop.f32.mrf.mxu0
    %v368 = vadd.f32 %v303, %v367
    %369 = vmatmul.f32.gmra.mxu0 %v65
    %v370 = vpop.f32.mrf.mxu0
    %v371 = vadd.f32 %v306, %v370
    %372 = vmatmul.f32.gmra.mxu0 %v72
    %v373 = vpop.f32.mrf.mxu0
    %v374 = vadd.f32 %v309, %v373
    %375 = vmatmul.f32.gmra.mxu0 %v79
    %v376 = vpop.f32.mrf.mxu0
    %v377 = vadd.f32 %v312, %v376
    %378 = vmatmul.f32.gmra.mxu0 %v86
    %v379 = vpop.f32.mrf.mxu0
    %v380 = vadd.f32 %v315, %v379
    %381 = vmatmul.f32.gmra.mxu0 %v93
    %v382 = vpop.f32.mrf.mxu0
    %v383 = vadd.f32 %v318, %v382
    %384 = vmatmul.f32.gmra.mxu0 %v100
    %v385 = vpop.f32.mrf.mxu0
    %v386 = vadd.f32 %v321, %v385
    %387 = vmatmul.f32.gmra.mxu0 %v107
    %v388 = vpop.f32.mrf.mxu0
    %v389 = vadd.f32 %v324, %v388
    %390 = vmatmul.f32.gmra.mxu0 %v114
    %v391 = vpop.f32.mrf.mxu0
    %v392 = vadd.f32 %v327, %v391
    %393 = vmatmul.f32.gmra.mxu0 %v121
    %v394 = vpop.f32.mrf.mxu0
    %v395 = vadd.f32 %v330, %v394
    %396 = vmatmul.f32.gmra.mxu0 %v128
    %v397 = vpop.f32.mrf.mxu0
    %v398 = vadd.f32 %v333, %v397
    %399 = vmatmul.f32.gmra.mxu0 %v135
    %v400 = vpop.f32.mrf.mxu0
    %v401 = vadd.f32 %v336, %v400
    %402 = vmatmul.f32.gmra.mxu0 %v142
    %v403 = vpop.f32.mrf.mxu0
    %v404 = vadd.f32 %v339, %v403
    %405 = vmatmul.f32.gmra.mxu0 %v149
    %v406 = vpop.f32.mrf.mxu0
    %v407 = vadd.f32 %v342, %v406
    %408 = vmatmul.f32.gmra.mxu0 %v156
    %v409 = vpop.f32.mrf.mxu0
    %v410 = vadd.f32 %v345, %v409
    %411 = vmatmul.f32.gmra.mxu0 %v163
    %v412 = vpop.f32.mrf.mxu0
    %v413 = vadd.f32 %v348, %v412
    %414 = vdwg.mxu0
    %415 = vmatpush.msra.mxu0 %v216
    %416 = vmatpush.msra.mxu0 %v215
    %417 = vmatpush.msra.mxu0 %v214
    %418 = vmatpush.msra.mxu0 %v213
    %419 = vmatpush.msra.mxu0 %v212
    %420 = vmatpush.msra.mxu0 %v211
    %421 = vmatpush.msra.mxu0 %v210
    %422 = vmatpush.msra.mxu0 %v209
    %423 = vmatpush.msra.mxu0 %v208
    %424 = vmatpush.msra.mxu0 %v207
    %425 = vmatpush.msra.mxu0 %v206
    %426 = vmatpush.msra.mxu0 %v205
    %427 = vmatpush.msra.mxu0 %v204
    %428 = vmatpush.msra.mxu0 %v203
    %429 = vmatpush.msra.mxu0 %v202
    %430 = vmatpush.msra.mxu0 %v201
    %431 = vmatmul.f32.gmra.mxu0 %v59
    %v432 = vpop.f32.mrf.mxu0
    %v433 = vadd.f32 %v368, %v432
    %434 = vmatmul.f32.gmra.mxu0 %v66
    %v435 = vpop.f32.mrf.mxu0
    %v436 = vadd.f32 %v371, %v435
    %437 = vmatmul.f32.gmra.mxu0 %v73
    %v438 = vpop.f32.mrf.mxu0
    %v439 = vadd.f32 %v374, %v438
    %440 = vmatmul.f32.gmra.mxu0 %v80
    %v441 = vpop.f32.mrf.mxu0
    %v442 = vadd.f32 %v377, %v441
    %443 = vmatmul.f32.gmra.mxu0 %v87
    %v444 = vpop.f32.mrf.mxu0
    %v445 = vadd.f32 %v380, %v444
    %446 = vmatmul.f32.gmra.mxu0 %v94
    %v447 = vpop.f32.mrf.mxu0
    %v448 = vadd.f32 %v383, %v447
    %449 = vmatmul.f32.gmra.mxu0 %v101
    %v450 = vpop.f32.mrf.mxu0
    %v451 = vadd.f32 %v386, %v450
    %452 = vmatmul.f32.gmra.mxu0 %v108
    %v453 = vpop.f32.mrf.mxu0
    %v454 = vadd.f32 %v389, %v453
    %455 = vmatmul.f32.gmra.mxu0 %v115
    %v456 = vpop.f32.mrf.mxu0
    %v457 = vadd.f32 %v392, %v456
    %458 = vmatmul.f32.gmra.mxu0 %v122
    %v459 = vpop.f32.mrf.mxu0
    %v460 = vadd.f32 %v395, %v459
    %461 = vmatmul.f32.gmra.mxu0 %v129
    %v462 = vpop.f32.mrf.mxu0
    %v463 = vadd.f32 %v398, %v462
    %464 = vmatmul.f32.gmra.mxu0 %v136
    %v465 = vpop.f32.mrf.mxu0
    %v466 = vadd.f32 %v401, %v465
    %467 = vmatmul.f32.gmra.mxu0 %v143
    %v468 = vpop.f32.mrf.mxu0
    %v469 = vadd.f32 %v404, %v468
    %470 = vmatmul.f32.gmra.mxu0 %v150
    %v471 = vpop.f32.mrf.mxu0
    %v472 = vadd.f32 %v407, %v471
    %473 = vmatmul.f32.gmra.mxu0 %v157
    %v474 = vpop.f32.mrf.mxu0
    %v475 = vadd.f32 %v410, %v474
    %476 = vmatmul.f32.gmra.mxu0 %v164
    %v477 = vpop.f32.mrf.mxu0
    %v478 = vadd.f32 %v413, %v477
    %479 = vdwg.mxu0
    %480 = vmatpush.msra.mxu0 %v232
    %481 = vmatpush.msra.mxu0 %v231
    %482 = vmatpush.msra.mxu0 %v230
    %483 = vmatpush.msra.mxu0 %v229
    %484 = vmatpush.msra.mxu0 %v228
    %485 = vmatpush.msra.mxu0 %v227
    %486 = vmatpush.msra.mxu0 %v226
    %487 = vmatpush.msra.mxu0 %v225
    %488 = vmatpush.msra.mxu0 %v224
    %489 = vmatpush.msra.mxu0 %v223
    %490 = vmatpush.msra.mxu0 %v222
    %491 = vmatpush.msra.mxu0 %v221
    %492 = vmatpush.msra.mxu0 %v220
    %493 = vmatpush.msra.mxu0 %v219
    %494 = vmatpush.msra.mxu0 %v218
    %495 = vmatpush.msra.mxu0 %v217
    %496 = vmatmul.f32.gmra.mxu0 %v60
    %v497 = vpop.f32.mrf.mxu0
    %v498 = vadd.f32 %v433, %v497
    %499 = vmatmul.f32.gmra.mxu0 %v67
    %v500 = vpop.f32.mrf.mxu0
    %v501 = vadd.f32 %v436, %v500
    %502 = vmatmul.f32.gmra.mxu0 %v74
    %v503 = vpop.f32.mrf.mxu0
    %v504 = vadd.f32 %v439, %v503
    %505 = vmatmul.f32.gmra.mxu0 %v81
    %v506 = vpop.f32.mrf.mxu0
    %v507 = vadd.f32 %v442, %v506
    %508 = vmatmul.f32.gmra.mxu0 %v88
    %v509 = vpop.f32.mrf.mxu0
    %v510 = vadd.f32 %v445, %v509
    %511 = vmatmul.f32.gmra.mxu0 %v95
    %v512 = vpop.f32.mrf.mxu0
    %v513 = vadd.f32 %v448, %v512
    %514 = vmatmul.f32.gmra.mxu0 %v102
    %v515 = vpop.f32.mrf.mxu0
    %v516 = vadd.f32 %v451, %v515
    %517 = vmatmul.f32.gmra.mxu0 %v109
    %v518 = vpop.f32.mrf.mxu0
    %v519 = vadd.f32 %v454, %v518
    %520 = vmatmul.f32.gmra.mxu0 %v116
    %v521 = vpop.f32.mrf.mxu0
    %v522 = vadd.f32 %v457, %v521
    %523 = vmatmul.f32.gmra.mxu0 %v123
    %v524 = vpop.f32.mrf.mxu0
    %v525 = vadd.f32 %v460, %v524
    %526 = vmatmul.f32.gmra.mxu0 %v130
    %v527 = vpop.f32.mrf.mxu0
    %v528 = vadd.f32 %v463, %v527
    %529 = vmatmul.f32.gmra.mxu0 %v137
    %v530 = vpop.f32.mrf.mxu0
    %v531 = vadd.f32 %v466, %v530
    %532 = vmatmul.f32.gmra.mxu0 %v144
    %v533 = vpop.f32.mrf.mxu0
    %v534 = vadd.f32 %v469, %v533
    %535 = vmatmul.f32.gmra.mxu0 %v151
    %v536 = vpop.f32.mrf.mxu0
    %v537 = vadd.f32 %v472, %v536
    %538 = vmatmul.f32.gmra.mxu0 %v158
    %v539 = vpop.f32.mrf.mxu0
    %v540 = vadd.f32 %v475, %v539
    %541 = vmatmul.f32.gmra.mxu0 %v165
    %v542 = vpop.f32.mrf.mxu0
    %v543 = vadd.f32 %v478, %v542
    %544 = vdwg.mxu0
    %545 = vmatpush.msra.mxu0 %v248
    %546 = vmatpush.msra.mxu0 %v247
    %547 = vmatpush.msra.mxu0 %v246
    %548 = vmatpush.msra.mxu0 %v245
    %549 = vmatpush.msra.mxu0 %v244
    %550 = vmatpush.msra.mxu0 %v243
    %551 = vmatpush.msra.mxu0 %v242
    %552 = vmatpush.msra.mxu0 %v241
    %553 = vmatpush.msra.mxu0 %v240
    %554 = vmatpush.msra.mxu0 %v239
    %555 = vmatpush.msra.mxu0 %v238
    %556 = vmatpush.msra.mxu0 %v237
    %557 = vmatpush.msra.mxu0 %v236
    %558 = vmatpush.msra.mxu0 %v235
    %559 = vmatpush.msra.mxu0 %v234
    %560 = vmatpush.msra.mxu0 %v233
    %561 = vmatmul.f32.gmra.mxu0 %v61
    %v562 = vpop.f32.mrf.mxu0
    %v563 = vadd.f32 %v498, %v562
    %564 = vmatmul.f32.gmra.mxu0 %v68
    %v565 = vpop.f32.mrf.mxu0
    %v566 = vadd.f32 %v501, %v565
    %567 = vmatmul.f32.gmra.mxu0 %v75
    %v568 = vpop.f32.mrf.mxu0
    %v569 = vadd.f32 %v504, %v568
    %570 = vmatmul.f32.gmra.mxu0 %v82
    %v571 = vpop.f32.mrf.mxu0
    %v572 = vadd.f32 %v507, %v571
    %573 = vmatmul.f32.gmra.mxu0 %v89
    %v574 = vpop.f32.mrf.mxu0
    %v575 = vadd.f32 %v510, %v574
    %576 = vmatmul.f32.gmra.mxu0 %v96
    %v577 = vpop.f32.mrf.mxu0
    %v578 = vadd.f32 %v513, %v577
    %579 = vmatmul.f32.gmra.mxu0 %v103
    %v580 = vpop.f32.mrf.mxu0
    %v581 = vadd.f32 %v516, %v580
    %582 = vmatmul.f32.gmra.mxu0 %v110
    %v583 = vpop.f32.mrf.mxu0
    %v584 = vadd.f32 %v519, %v583
    %585 = vmatmul.f32.gmra.mxu0 %v117
    %v586 = vpop.f32.mrf.mxu0
    %v587 = vadd.f32 %v522, %v586
    %588 = vmatmul.f32.gmra.mxu0 %v124
    %v589 = vpop.f32.mrf.mxu0
    %v590 = vadd.f32 %v525, %v589
    %591 = vmatmul.f32.gmra.mxu0 %v131
    %v592 = vpop.f32.mrf.mxu0
    %v593 = vadd.f32 %v528, %v592
    %594 = vmatmul.f32.gmra.mxu0 %v138
    %v595 = vpop.f32.mrf.mxu0
    %v596 = vadd.f32 %v531, %v595
    %597 = vmatmul.f32.gmra.mxu0 %v145
    %v598 = vpop.f32.mrf.mxu0
    %v599 = vadd.f32 %v534, %v598
    %600 = vmatmul.f32.gmra.mxu0 %v152
    %v601 = vpop.f32.mrf.mxu0
    %v602 = vadd.f32 %v537, %v601
    %603 = vmatmul.f32.gmra.mxu0 %v159
    %v604 = vpop.f32.mrf.mxu0
    %v605 = vadd.f32 %v540, %v604
    %606 = vmatmul.f32.gmra.mxu0 %v166
    %v607 = vpop.f32.mrf.mxu0
    %v608 = vadd.f32 %v543, %v607
    %609 = vdwg.mxu0
    %610 = vmatpush.msra.mxu0 %v264
    %611 = vmatpush.msra.mxu0 %v263
    %612 = vmatpush.msra.mxu0 %v262
    %613 = vmatpush.msra.mxu0 %v261
    %614 = vmatpush.msra.mxu0 %v260
    %615 = vmatpush.msra.mxu0 %v259
    %616 = vmatpush.msra.mxu0 %v258
    %617 = vmatpush.msra.mxu0 %v257
    %618 = vmatpush.msra.mxu0 %v256
    %619 = vmatpush.msra.mxu0 %v255
    %620 = vmatpush.msra.mxu0 %v254
    %621 = vmatpush.msra.mxu0 %v253
    %622 = vmatpush.msra.mxu0 %v252
    %623 = vmatpush.msra.mxu0 %v251
    %624 = vmatpush.msra.mxu0 %v250
    %625 = vmatpush.msra.mxu0 %v249
    %626 = vmatmul.f32.gmra.mxu0 %v62
    %v627 = vpop.f32.mrf.mxu0
    %v628 = vadd.f32 %v563, %v627
    %629 = vmatmul.f32.gmra.mxu0 %v69
    %v630 = vpop.f32.mrf.mxu0
    %v631 = vadd.f32 %v566, %v630
    %632 = vmatmul.f32.gmra.mxu0 %v76
    %v633 = vpop.f32.mrf.mxu0
    %v634 = vadd.f32 %v569, %v633
    %635 = vmatmul.f32.gmra.mxu0 %v83
    %v636 = vpop.f32.mrf.mxu0
    %v637 = vadd.f32 %v572, %v636
    %638 = vmatmul.f32.gmra.mxu0 %v90
    %v639 = vpop.f32.mrf.mxu0
    %v640 = vadd.f32 %v575, %v639
    %641 = vmatmul.f32.gmra.mxu0 %v97
    %v642 = vpop.f32.mrf.mxu0
    %v643 = vadd.f32 %v578, %v642
    %644 = vmatmul.f32.gmra.mxu0 %v104
    %v645 = vpop.f32.mrf.mxu0
    %v646 = vadd.f32 %v581, %v645
    %647 = vmatmul.f32.gmra.mxu0 %v111
    %v648 = vpop.f32.mrf.mxu0
    %v649 = vadd.f32 %v584, %v648
    %650 = vmatmul.f32.gmra.mxu0 %v118
    %v651 = vpop.f32.mrf.mxu0
    %v652 = vadd.f32 %v587, %v651
    %653 = vmatmul.f32.gmra.mxu0 %v125
    %v654 = vpop.f32.mrf.mxu0
    %v655 = vadd.f32 %v590, %v654
    %656 = vmatmul.f32.gmra.mxu0 %v132
    %v657 = vpop.f32.mrf.mxu0
    %v658 = vadd.f32 %v593, %v657
    %659 = vmatmul.f32.gmra.mxu0 %v139
    %v660 = vpop.f32.mrf.mxu0
    %v661 = vadd.f32 %v596, %v660
    %662 = vmatmul.f32.gmra.mxu0 %v146
    %v663 = vpop.f32.mrf.mxu0
    %v664 = vadd.f32 %v599, %v663
    %665 = vmatmul.f32.gmra.mxu0 %v153
    %v666 = vpop.f32.mrf.mxu0
    %v667 = vadd.f32 %v602, %v666
    %668 = vmatmul.f32.gmra.mxu0 %v160
    %v669 = vpop.f32.mrf.mxu0
    %v670 = vadd.f32 %v605, %v669
    %671 = vmatmul.f32.gmra.mxu0 %v167
    %v672 = vpop.f32.mrf.mxu0
    %v673 = vadd.f32 %v608, %v672
    %674 = vdwg.mxu0
    %675 = vmatpush.msra.mxu0 %v280
    %676 = vmatpush.msra.mxu0 %v279
    %677 = vmatpush.msra.mxu0 %v278
    %678 = vmatpush.msra.mxu0 %v277
    %679 = vmatpush.msra.mxu0 %v276
    %680 = vmatpush.msra.mxu0 %v275
    %681 = vmatpush.msra.mxu0 %v274
    %682 = vmatpush.msra.mxu0 %v273
    %683 = vmatpush.msra.mxu0 %v272
    %684 = vmatpush.msra.mxu0 %v271
    %685 = vmatpush.msra.mxu0 %v270
    %686 = vmatpush.msra.mxu0 %v269
    %687 = vmatpush.msra.mxu0 %v268
    %688 = vmatpush.msra.mxu0 %v267
    %689 = vmatpush.msra.mxu0 %v266
    %690 = vmatpush.msra.mxu0 %v265
    %691 = vmatmul.f32.gmra.mxu0 %v63
    %v692 = vpop.f32.mrf.mxu0
    %v693 = vadd.f32 %v628, %v692
    %694 = vmatmul.f32.gmra.mxu0 %v70
    %v695 = vpop.f32.mrf.mxu0
    %v696 = vadd.f32 %v631, %v695
    %697 = vmatmul.f32.gmra.mxu0 %v77
    %v698 = vpop.f32.mrf.mxu0
    %v699 = vadd.f32 %v634, %v698
    %700 = vmatmul.f32.gmra.mxu0 %v84
    %v701 = vpop.f32.mrf.mxu0
    %v702 = vadd.f32 %v637, %v701
    %703 = vmatmul.f32.gmra.mxu0 %v91
    %v704 = vpop.f32.mrf.mxu0
    %v705 = vadd.f32 %v640, %v704
    %706 = vmatmul.f32.gmra.mxu0 %v98
    %v707 = vpop.f32.mrf.mxu0
    %v708 = vadd.f32 %v643, %v707
    %709 = vmatmul.f32.gmra.mxu0 %v105
    %v710 = vpop.f32.mrf.mxu0
    %v711 = vadd.f32 %v646, %v710
    %712 = vmatmul.f32.gmra.mxu0 %v112
    %v713 = vpop.f32.mrf.mxu0
    %v714 = vadd.f32 %v649, %v713
    %715 = vmatmul.f32.gmra.mxu0 %v119
    %v716 = vpop.f32.mrf.mxu0
    %v717 = vadd.f32 %v652, %v716
    %718 = vmatmul.f32.gmra.mxu0 %v126
    %v719 = vpop.f32.mrf.mxu0
    %v720 = vadd.f32 %v655, %v719
    %721 = vmatmul.f32.gmra.mxu0 %v133
    %v722 = vpop.f32.mrf.mxu0
    %v723 = vadd.f32 %v658, %v722
    %724 = vmatmul.f32.gmra.mxu0 %v140
    %v725 = vpop.f32.mrf.mxu0
    %v726 = vadd.f32 %v661, %v725
    %727 = vmatmul.f32.gmra.mxu0 %v147
    %v728 = vpop.f32.mrf.mxu0
    %v729 = vadd.f32 %v664, %v728
    %730 = vmatmul.f32.gmra.mxu0 %v154
    %v731 = vpop.f32.mrf.mxu0
    %v732 = vadd.f32 %v667, %v731
    %733 = vmatmul.f32.gmra.mxu0 %v161
    %v734 = vpop.f32.mrf.mxu0
    %v735 = vadd.f32 %v670, %v734
    %736 = vmatmul.f32.gmra.mxu0 %v168
    %v737 = vpop.f32.mrf.mxu0
    %v738 = vadd.f32 %v673, %v737
    %739 = vdwg.mxu0
    %v740 = vmax.f32 %v693, 0.0
    %v741 = vmax.f32 %v696, 0.0
    %v742 = vmax.f32 %v699, 0.0
    %v743 = vmax.f32 %v702, 0.0
    %v744 = vmax.f32 %v705, 0.0
    %v745 = vmax.f32 %v708, 0.0
    %v746 = vmax.f32 %v711, 0.0
    %v747 = vmax.f32 %v714, 0.0
    %v748 = vmax.f32 %v717, 0.0
    %v749 = vmax.f32 %v720, 0.0
    %v750 = vmax.f32 %v723, 0.0
    %v751 = vmax.f32 %v726, 0.0
    %v752 = vmax.f32 %v729, 0.0
    %v753 = vmax.f32 %v732, 0.0
    %v754 = vmax.f32 %v735, 0.0
    %v755 = vmax.f32 %v738, 0.0
    %v756 = vld [vmem:[%s3] sm:$0xff]
    %v757 = vld [vmem:[%s3 + $0x8] sm:$0xff]
    %v758 = vld [vmem:[%s3 + $0x10] sm:$0xff]
    %v759 = vld [vmem:[%s3 + $0x18] sm:$0xff]
    %v760 = vld [vmem:[%s3 + $0x20] sm:$0xff]
    %v761 = vld [vmem:[%s3 + $0x28] sm:$0xff]
    %v762 = vld [vmem:[%s3 + $0x30] sm:$0xff]
    %v763 = vld [vmem:[%s3 + $0x38] sm:$0xff]
    %v764 = vld [vmem:[%s4] sm:$0x1]
    %v766 = vperm.slane %v764, 0
    %vm768 = vcmask 523264
    %v770 = vsel %vm768, %v740, 0
    %v773 = vsel %vm768, %v741, 0
    %v776 = vsel %vm768, %v742, 0
    %v779 = vsel %vm768, %v743, 0
    %v782 = vsel %vm768, %v744, 0
    %v785 = vsel %vm768, %v745, 0
    %v788 = vsel %vm768, %v746, 0
    %v791 = vsel %vm768, %v747, 0
    %v794 = vsel %vm768, %v748, 0
    %v797 = vsel %vm768, %v749, 0
    %v800 = vsel %vm768, %v750, 0
    %v803 = vsel %vm768, %v751, 0
    %v806 = vsel %vm768, %v752, 0
    %v809 = vsel %vm768, %v753, 0
    %v812 = vsel %vm768, %v754, 0
    %v815 = vsel %vm768, %v755, 0
    %817 = vmatpush.msra.mxu0 0.0
    %818 = vmatpush.msra.mxu0 0.0
    %819 = vmatpush.msra.mxu0 0.0
    %820 = vmatpush.msra.mxu0 0.0
    %821 = vmatpush.msra.mxu0 0.0
    %822 = vmatpush.msra.mxu0 0.0
    %823 = vmatpush.msra.mxu0 0.0
    %824 = vmatpush.msra.mxu0 0.0
    %825 = vmatpush.msra.mxu0 %v763
    %826 = vmatpush.msra.mxu0 %v762
    %827 = vmatpush.msra.mxu0 %v761
    %828 = vmatpush.msra.mxu0 %v760
    %829 = vmatpush.msra.mxu0 %v759
    %830 = vmatpush.msra.mxu0 %v758
    %831 = vmatpush.msra.mxu0 %v757
    %832 = vmatpush.msra.mxu0 %v756
    %833 = vmatmul.f32.gmra.mxu0 %v770
    %v834 = vpop.f32.mrf.mxu0
    %v835 = vadd.f32 %v766, %v834
    %836 = vmatmul.f32.gmra.mxu0 %v773
    %v837 = vpop.f32.mrf.mxu0
    %v838 = vadd.f32 %v766, %v837
    %839 = vmatmul.f32.gmra.mxu0 %v776
    %v840 = vpop.f32.mrf.mxu0
    %v841 = vadd.f32 %v766, %v840
    %842 = vmatmul.f32.gmra.mxu0 %v779
    %v843 = vpop.f32.mrf.mxu0
    %v844 = vadd.f32 %v766, %v843
    %845 = vmatmul.f32.gmra.mxu0 %v782
    %v846 = vpop.f32.mrf.mxu0
    %v847 = vadd.f32 %v766, %v846
    %848 = vmatmul.f32.gmra.mxu0 %v785
    %v849 = vpop.f32.mrf.mxu0
    %v850 = vadd.f32 %v766, %v849
    %851 = vmatmul.f32.gmra.mxu0 %v788
    %v852 = vpop.f32.mrf.mxu0
    %v853 = vadd.f32 %v766, %v852
    %854 = vmatmul.f32.gmra.mxu0 %v791
    %v855 = vpop.f32.mrf.mxu0
    %v856 = vadd.f32 %v766, %v855
    %857 = vmatmul.f32.gmra.mxu0 %v794
    %v858 = vpop.f32.mrf.mxu0
    %v859 = vadd.f32 %v766, %v858
    %860 = vmatmul.f32.gmra.mxu0 %v797
    %v861 = vpop.f32.mrf.mxu0
    %v862 = vadd.f32 %v766, %v861
    %863 = vmatmul.f32.gmra.mxu0 %v800
    %v864 = vpop.f32.mrf.mxu0
    %v865 = vadd.f32 %v766, %v864
    %866 = vmatmul.f32.gmra.mxu0 %v803
    %v867 = vpop.f32.mrf.mxu0
    %v868 = vadd.f32 %v766, %v867
    %869 = vmatmul.f32.gmra.mxu0 %v806
    %v870 = vpop.f32.mrf.mxu0
    %v871 = vadd.f32 %v766, %v870
    %872 = vmatmul.f32.gmra.mxu0 %v809
    %v873 = vpop.f32.mrf.mxu0
    %v874 = vadd.f32 %v766, %v873
    %875 = vmatmul.f32.gmra.mxu0 %v812
    %v876 = vpop.f32.mrf.mxu0
    %v877 = vadd.f32 %v766, %v876
    %878 = vmatmul.f32.gmra.mxu0 %v815
    %v879 = vpop.f32.mrf.mxu0
    %v880 = vadd.f32 %v766, %v879
    %881 = vdwg.mxu0
    %v882 = vmax.f32 %v835, 0.0
    %v883 = vmax.f32 %v838, 0.0
    %v884 = vmax.f32 %v841, 0.0
    %v885 = vmax.f32 %v844, 0.0
    %v886 = vmax.f32 %v847, 0.0
    %v887 = vmax.f32 %v850, 0.0
    %v888 = vmax.f32 %v853, 0.0
    %v889 = vmax.f32 %v856, 0.0
    %v890 = vmax.f32 %v859, 0.0
    %v891 = vmax.f32 %v862, 0.0
    %v892 = vmax.f32 %v865, 0.0
    %v893 = vmax.f32 %v868, 0.0
    %v894 = vmax.f32 %v871, 0.0
    %v895 = vmax.f32 %v874, 0.0
    %v896 = vmax.f32 %v877, 0.0
    %v897 = vmax.f32 %v880, 0.0
    %v898 = vld [vmem:[%s5] sm:$0xff]
    %v899 = vld [vmem:[%s5 + $0x8] sm:$0xff]
    %v900 = vld [vmem:[%s5 + $0x10] sm:$0xff]
    %v901 = vld [vmem:[%s5 + $0x18] sm:$0xff]
    %v902 = vld [vmem:[%s5 + $0x20] sm:$0xff]
    %v903 = vld [vmem:[%s5 + $0x28] sm:$0xff]
    %v904 = vld [vmem:[%s5 + $0x30] sm:$0xff]
    %v905 = vld [vmem:[%s5 + $0x38] sm:$0xff]
    %v906 = vld [vmem:[%s6] sm:$0x1]
    %v908 = vperm.slane %v906, 0
    %v911 = vsel %vm768, %v882, 0
    %v914 = vsel %vm768, %v883, 0
    %v917 = vsel %vm768, %v884, 0
    %v920 = vsel %vm768, %v885, 0
    %v923 = vsel %vm768, %v886, 0
    %v926 = vsel %vm768, %v887, 0
    %v929 = vsel %vm768, %v888, 0
    %v932 = vsel %vm768, %v889, 0
    %v935 = vsel %vm768, %v890, 0
    %v938 = vsel %vm768, %v891, 0
    %v941 = vsel %vm768, %v892, 0
    %v944 = vsel %vm768, %v893, 0
    %v947 = vsel %vm768, %v894, 0
    %v950 = vsel %vm768, %v895, 0
    %v953 = vsel %vm768, %v896, 0
    %v956 = vsel %vm768, %v897, 0
    %958 = vmatpush.msra.mxu0 0.0
    %959 = vmatpush.msra.mxu0 0.0
    %960 = vmatpush.msra.mxu0 0.0
    %961 = vmatpush.msra.mxu0 0.0
    %962 = vmatpush.msra.mxu0 0.0
    %963 = vmatpush.msra.mxu0 0.0
    %964 = vmatpush.msra.mxu0 0.0
    %965 = vmatpush.msra.mxu0 0.0
    %966 = vmatpush.msra.mxu0 %v905
    %967 = vmatpush.msra.mxu0 %v904
    %968 = vmatpush.msra.mxu0 %v903
    %969 = vmatpush.msra.mxu0 %v902
    %970 = vmatpush.msra.mxu0 %v901
    %971 = vmatpush.msra.mxu0 %v900
    %972 = vmatpush.msra.mxu0 %v899
    %973 = vmatpush.msra.mxu0 %v898
    %974 = vmatmul.f32.gmra.mxu0 %v911
    %v975 = vpop.f32.mrf.mxu0
    %v976 = vadd.f32 %v908, %v975
    %977 = vmatmul.f32.gmra.mxu0 %v914
    %v978 = vpop.f32.mrf.mxu0
    %v979 = vadd.f32 %v908, %v978
    %980 = vmatmul.f32.gmra.mxu0 %v917
    %v981 = vpop.f32.mrf.mxu0
    %v982 = vadd.f32 %v908, %v981
    %983 = vmatmul.f32.gmra.mxu0 %v920
    %v984 = vpop.f32.mrf.mxu0
    %v985 = vadd.f32 %v908, %v984
    %986 = vmatmul.f32.gmra.mxu0 %v923
    %v987 = vpop.f32.mrf.mxu0
    %v988 = vadd.f32 %v908, %v987
    %989 = vmatmul.f32.gmra.mxu0 %v926
    %v990 = vpop.f32.mrf.mxu0
    %v991 = vadd.f32 %v908, %v990
    %992 = vmatmul.f32.gmra.mxu0 %v929
    %v993 = vpop.f32.mrf.mxu0
    %v994 = vadd.f32 %v908, %v993
    %995 = vmatmul.f32.gmra.mxu0 %v932
    %v996 = vpop.f32.mrf.mxu0
    %v997 = vadd.f32 %v908, %v996
    %998 = vmatmul.f32.gmra.mxu0 %v935
    %v999 = vpop.f32.mrf.mxu0
    %v1000 = vadd.f32 %v908, %v999
    %1001 = vmatmul.f32.gmra.mxu0 %v938
    %v1002 = vpop.f32.mrf.mxu0
    %v1003 = vadd.f32 %v908, %v1002
    %1004 = vmatmul.f32.gmra.mxu0 %v941
    %v1005 = vpop.f32.mrf.mxu0
    %v1006 = vadd.f32 %v908, %v1005
    %1007 = vmatmul.f32.gmra.mxu0 %v944
    %v1008 = vpop.f32.mrf.mxu0
    %v1009 = vadd.f32 %v908, %v1008
    %1010 = vmatmul.f32.gmra.mxu0 %v947
    %v1011 = vpop.f32.mrf.mxu0
    %v1012 = vadd.f32 %v908, %v1011
    %1013 = vmatmul.f32.gmra.mxu0 %v950
    %v1014 = vpop.f32.mrf.mxu0
    %v1015 = vadd.f32 %v908, %v1014
    %1016 = vmatmul.f32.gmra.mxu0 %v953
    %v1017 = vpop.f32.mrf.mxu0
    %v1018 = vadd.f32 %v908, %v1017
    %1019 = vmatmul.f32.gmra.mxu0 %v956
    %v1020 = vpop.f32.mrf.mxu0
    %v1021 = vadd.f32 %v908, %v1020
    %1022 = vdwg.mxu0
    %v1023 = vmax.f32 %v976, 0.0
    %v1024 = vmax.f32 %v979, 0.0
    %v1025 = vmax.f32 %v982, 0.0
    %v1026 = vmax.f32 %v985, 0.0
    %v1027 = vmax.f32 %v988, 0.0
    %v1028 = vmax.f32 %v991, 0.0
    %v1029 = vmax.f32 %v994, 0.0
    %v1030 = vmax.f32 %v997, 0.0
    %v1031 = vmax.f32 %v1000, 0.0
    %v1032 = vmax.f32 %v1003, 0.0
    %v1033 = vmax.f32 %v1006, 0.0
    %v1034 = vmax.f32 %v1009, 0.0
    %v1035 = vmax.f32 %v1012, 0.0
    %v1036 = vmax.f32 %v1015, 0.0
    %v1037 = vmax.f32 %v1018, 0.0
    %v1038 = vmax.f32 %v1021, 0.0
    %v1039 = vld [vmem:[%s7] sm:$0xff]
    %v1040 = vld [vmem:[%s7 + $0x8] sm:$0xff]
    %v1041 = vld [vmem:[%s7 + $0x10] sm:$0xff]
    %v1042 = vld [vmem:[%s7 + $0x18] sm:$0xff]
    %v1043 = vld [vmem:[%s7 + $0x20] sm:$0xff]
    %v1044 = vld [vmem:[%s7 + $0x28] sm:$0xff]
    %v1045 = vld [vmem:[%s7 + $0x30] sm:$0xff]
    %v1046 = vld [vmem:[%s7 + $0x38] sm:$0xff]
    %v1047 = vld [vmem:[%s8] sm:$0x1]
    %v1049 = vperm.slane %v1047, 0
    %v1052 = vsel %vm768, %v1023, 0
    %v1055 = vsel %vm768, %v1024, 0
    %v1058 = vsel %vm768, %v1025, 0
    %v1061 = vsel %vm768, %v1026, 0
    %v1064 = vsel %vm768, %v1027, 0
    %v1067 = vsel %vm768, %v1028, 0
    %v1070 = vsel %vm768, %v1029, 0
    %v1073 = vsel %vm768, %v1030, 0
    %v1076 = vsel %vm768, %v1031, 0
    %v1079 = vsel %vm768, %v1032, 0
    %v1082 = vsel %vm768, %v1033, 0
    %v1085 = vsel %vm768, %v1034, 0
    %v1088 = vsel %vm768, %v1035, 0
    %v1091 = vsel %vm768, %v1036, 0
    %v1094 = vsel %vm768, %v1037, 0
    %v1097 = vsel %vm768, %v1038, 0
    %1099 = vmatpush.msra.mxu0 0.0
    %1100 = vmatpush.msra.mxu0 0.0
    %1101 = vmatpush.msra.mxu0 0.0
    %1102 = vmatpush.msra.mxu0 0.0
    %1103 = vmatpush.msra.mxu0 0.0
    %1104 = vmatpush.msra.mxu0 0.0
    %1105 = vmatpush.msra.mxu0 0.0
    %1106 = vmatpush.msra.mxu0 0.0
    %1107 = vmatpush.msra.mxu0 %v1046
    %1108 = vmatpush.msra.mxu0 %v1045
    %1109 = vmatpush.msra.mxu0 %v1044
    %1110 = vmatpush.msra.mxu0 %v1043
    %1111 = vmatpush.msra.mxu0 %v1042
    %1112 = vmatpush.msra.mxu0 %v1041
    %1113 = vmatpush.msra.mxu0 %v1040
    %1114 = vmatpush.msra.mxu0 %v1039
    %1115 = vmatmul.f32.gmra.mxu0 %v1052
    %v1116 = vpop.f32.mrf.mxu0
    %v1117 = vadd.f32 %v1049, %v1116
    %1118 = vmatmul.f32.gmra.mxu0 %v1055
    %v1119 = vpop.f32.mrf.mxu0
    %v1120 = vadd.f32 %v1049, %v1119
    %1121 = vmatmul.f32.gmra.mxu0 %v1058
    %v1122 = vpop.f32.mrf.mxu0
    %v1123 = vadd.f32 %v1049, %v1122
    %1124 = vmatmul.f32.gmra.mxu0 %v1061
    %v1125 = vpop.f32.mrf.mxu0
    %v1126 = vadd.f32 %v1049, %v1125
    %1127 = vmatmul.f32.gmra.mxu0 %v1064
    %v1128 = vpop.f32.mrf.mxu0
    %v1129 = vadd.f32 %v1049, %v1128
    %1130 = vmatmul.f32.gmra.mxu0 %v1067
    %v1131 = vpop.f32.mrf.mxu0
    %v1132 = vadd.f32 %v1049, %v1131
    %1133 = vmatmul.f32.gmra.mxu0 %v1070
    %v1134 = vpop.f32.mrf.mxu0
    %v1135 = vadd.f32 %v1049, %v1134
    %1136 = vmatmul.f32.gmra.mxu0 %v1073
    %v1137 = vpop.f32.mrf.mxu0
    %v1138 = vadd.f32 %v1049, %v1137
    %1139 = vmatmul.f32.gmra.mxu0 %v1076
    %v1140 = vpop.f32.mrf.mxu0
    %v1141 = vadd.f32 %v1049, %v1140
    %1142 = vmatmul.f32.gmra.mxu0 %v1079
    %v1143 = vpop.f32.mrf.mxu0
    %v1144 = vadd.f32 %v1049, %v1143
    %1145 = vmatmul.f32.gmra.mxu0 %v1082
    %v1146 = vpop.f32.mrf.mxu0
    %v1147 = vadd.f32 %v1049, %v1146
    %1148 = vmatmul.f32.gmra.mxu0 %v1085
    %v1149 = vpop.f32.mrf.mxu0
    %v1150 = vadd.f32 %v1049, %v1149
    %1151 = vmatmul.f32.gmra.mxu0 %v1088
    %v1152 = vpop.f32.mrf.mxu0
    %v1153 = vadd.f32 %v1049, %v1152
    %1154 = vmatmul.f32.gmra.mxu0 %v1091
    %v1155 = vpop.f32.mrf.mxu0
    %v1156 = vadd.f32 %v1049, %v1155
    %1157 = vmatmul.f32.gmra.mxu0 %v1094
    %v1158 = vpop.f32.mrf.mxu0
    %v1159 = vadd.f32 %v1049, %v1158
    %1160 = vmatmul.f32.gmra.mxu0 %v1097
    %v1161 = vpop.f32.mrf.mxu0
    %v1162 = vadd.f32 %v1049, %v1161
    %1163 = vdwg.mxu0
    %v1164 = vmax.f32 %v1117, 0.0
    %v1165 = vmax.f32 %v1120, 0.0
    %v1166 = vmax.f32 %v1123, 0.0
    %v1167 = vmax.f32 %v1126, 0.0
    %v1168 = vmax.f32 %v1129, 0.0
    %v1169 = vmax.f32 %v1132, 0.0
    %v1170 = vmax.f32 %v1135, 0.0
    %v1171 = vmax.f32 %v1138, 0.0
    %v1172 = vmax.f32 %v1141, 0.0
    %v1173 = vmax.f32 %v1144, 0.0
    %v1174 = vmax.f32 %v1147, 0.0
    %v1175 = vmax.f32 %v1150, 0.0
    %v1176 = vmax.f32 %v1153, 0.0
    %v1177 = vmax.f32 %v1156, 0.0
    %v1178 = vmax.f32 %v1159, 0.0
    %v1179 = vmax.f32 %v1162, 0.0
    %v1180 = vld [vmem:[%s9] sm:$0xff]
    %v1181 = vld [vmem:[%s9 + $0x8] sm:$0xff]
    %v1182 = vld [vmem:[%s9 + $0x10] sm:$0xff]
    %v1183 = vld [vmem:[%s9 + $0x18] sm:$0xff]
    %v1184 = vld [vmem:[%s9 + $0x20] sm:$0xff]
    %v1185 = vld [vmem:[%s9 + $0x28] sm:$0xff]
    %v1186 = vld [vmem:[%s9 + $0x30] sm:$0xff]
    %v1187 = vld [vmem:[%s9 + $0x38] sm:$0xff]
    %v1188 = vld [vmem:[%s10] sm:$0x1]
    %v1190 = vperm.slane %v1188, 0
    %v1193 = vsel %vm768, %v1164, 0
    %v1196 = vsel %vm768, %v1165, 0
    %v1199 = vsel %vm768, %v1166, 0
    %v1202 = vsel %vm768, %v1167, 0
    %v1205 = vsel %vm768, %v1168, 0
    %v1208 = vsel %vm768, %v1169, 0
    %v1211 = vsel %vm768, %v1170, 0
    %v1214 = vsel %vm768, %v1171, 0
    %v1217 = vsel %vm768, %v1172, 0
    %v1220 = vsel %vm768, %v1173, 0
    %v1223 = vsel %vm768, %v1174, 0
    %v1226 = vsel %vm768, %v1175, 0
    %v1229 = vsel %vm768, %v1176, 0
    %v1232 = vsel %vm768, %v1177, 0
    %v1235 = vsel %vm768, %v1178, 0
    %v1238 = vsel %vm768, %v1179, 0
    %1240 = vmatpush.msra.mxu0 0.0
    %1241 = vmatpush.msra.mxu0 0.0
    %1242 = vmatpush.msra.mxu0 0.0
    %1243 = vmatpush.msra.mxu0 0.0
    %1244 = vmatpush.msra.mxu0 0.0
    %1245 = vmatpush.msra.mxu0 0.0
    %1246 = vmatpush.msra.mxu0 0.0
    %1247 = vmatpush.msra.mxu0 0.0
    %1248 = vmatpush.msra.mxu0 %v1187
    %1249 = vmatpush.msra.mxu0 %v1186
    %1250 = vmatpush.msra.mxu0 %v1185
    %1251 = vmatpush.msra.mxu0 %v1184
    %1252 = vmatpush.msra.mxu0 %v1183
    %1253 = vmatpush.msra.mxu0 %v1182
    %1254 = vmatpush.msra.mxu0 %v1181
    %1255 = vmatpush.msra.mxu0 %v1180
    %1256 = vmatmul.f32.gmra.mxu0 %v1193
    %v1257 = vpop.f32.mrf.mxu0
    %v1258 = vadd.f32 %v1190, %v1257
    %1259 = vmatmul.f32.gmra.mxu0 %v1196
    %v1260 = vpop.f32.mrf.mxu0
    %v1261 = vadd.f32 %v1190, %v1260
    %1262 = vmatmul.f32.gmra.mxu0 %v1199
    %v1263 = vpop.f32.mrf.mxu0
    %v1264 = vadd.f32 %v1190, %v1263
    %1265 = vmatmul.f32.gmra.mxu0 %v1202
    %v1266 = vpop.f32.mrf.mxu0
    %v1267 = vadd.f32 %v1190, %v1266
    %1268 = vmatmul.f32.gmra.mxu0 %v1205
    %v1269 = vpop.f32.mrf.mxu0
    %v1270 = vadd.f32 %v1190, %v1269
    %1271 = vmatmul.f32.gmra.mxu0 %v1208
    %v1272 = vpop.f32.mrf.mxu0
    %v1273 = vadd.f32 %v1190, %v1272
    %1274 = vmatmul.f32.gmra.mxu0 %v1211
    %v1275 = vpop.f32.mrf.mxu0
    %v1276 = vadd.f32 %v1190, %v1275
    %1277 = vmatmul.f32.gmra.mxu0 %v1214
    %v1278 = vpop.f32.mrf.mxu0
    %v1279 = vadd.f32 %v1190, %v1278
    %1280 = vmatmul.f32.gmra.mxu0 %v1217
    %v1281 = vpop.f32.mrf.mxu0
    %v1282 = vadd.f32 %v1190, %v1281
    %1283 = vmatmul.f32.gmra.mxu0 %v1220
    %v1284 = vpop.f32.mrf.mxu0
    %v1285 = vadd.f32 %v1190, %v1284
    %1286 = vmatmul.f32.gmra.mxu0 %v1223
    %v1287 = vpop.f32.mrf.mxu0
    %v1288 = vadd.f32 %v1190, %v1287
    %1289 = vmatmul.f32.gmra.mxu0 %v1226
    %v1290 = vpop.f32.mrf.mxu0
    %v1291 = vadd.f32 %v1190, %v1290
    %1292 = vmatmul.f32.gmra.mxu0 %v1229
    %v1293 = vpop.f32.mrf.mxu0
    %v1294 = vadd.f32 %v1190, %v1293
    %1295 = vmatmul.f32.gmra.mxu0 %v1232
    %v1296 = vpop.f32.mrf.mxu0
    %v1297 = vadd.f32 %v1190, %v1296
    %1298 = vmatmul.f32.gmra.mxu0 %v1235
    %v1299 = vpop.f32.mrf.mxu0
    %v1300 = vadd.f32 %v1190, %v1299
    %1301 = vmatmul.f32.gmra.mxu0 %v1238
    %v1302 = vpop.f32.mrf.mxu0
    %v1303 = vadd.f32 %v1190, %v1302
    %1304 = vdwg.mxu0
    %v1305 = vld [vmem:[%s11] sm:$0xff]
    %v1306 = vld [vmem:[%s11 + $0x8] sm:$0xff]
    %v1307 = vld [vmem:[%s11 + $0x10] sm:$0xff]
    %v1308 = vld [vmem:[%s11 + $0x18] sm:$0xff]
    %v1309 = vld [vmem:[%s11 + $0x20] sm:$0xff]
    %v1310 = vld [vmem:[%s11 + $0x28] sm:$0xff]
    %v1311 = vld [vmem:[%s11 + $0x30] sm:$0xff]
    %v1312 = vld [vmem:[%s11 + $0x38] sm:$0xff]
    %v1313 = vld [vmem:[%s12] sm:$0x1]
    %v1315 = vperm.slane %v1313, 0
    %v1318 = vsel %vm768, %v1258, 0
    %v1321 = vsel %vm768, %v1261, 0
    %v1324 = vsel %vm768, %v1264, 0
    %v1327 = vsel %vm768, %v1267, 0
    %v1330 = vsel %vm768, %v1270, 0
    %v1333 = vsel %vm768, %v1273, 0
    %v1336 = vsel %vm768, %v1276, 0
    %v1339 = vsel %vm768, %v1279, 0
    %v1342 = vsel %vm768, %v1282, 0
    %v1345 = vsel %vm768, %v1285, 0
    %v1348 = vsel %vm768, %v1288, 0
    %v1351 = vsel %vm768, %v1291, 0
    %v1354 = vsel %vm768, %v1294, 0
    %v1357 = vsel %vm768, %v1297, 0
    %v1360 = vsel %vm768, %v1300, 0
    %v1363 = vsel %vm768, %v1303, 0
    %1365 = vmatpush.msra.mxu0 0.0
    %1366 = vmatpush.msra.mxu0 0.0
    %1367 = vmatpush.msra.mxu0 0.0
    %1368 = vmatpush.msra.mxu0 0.0
    %1369 = vmatpush.msra.mxu0 0.0
    %1370 = vmatpush.msra.mxu0 0.0
    %1371 = vmatpush.msra.mxu0 0.0
    %1372 = vmatpush.msra.mxu0 0.0
    %1373 = vmatpush.msra.mxu0 %v1312
    %1374 = vmatpush.msra.mxu0 %v1311
    %1375 = vmatpush.msra.mxu0 %v1310
    %1376 = vmatpush.msra.mxu0 %v1309
    %1377 = vmatpush.msra.mxu0 %v1308
    %1378 = vmatpush.msra.mxu0 %v1307
    %1379 = vmatpush.msra.mxu0 %v1306
    %1380 = vmatpush.msra.mxu0 %v1305
    %1381 = vmatmul.f32.gmra.mxu0 %v1318
    %v1382 = vpop.f32.mrf.mxu0
    %v1383 = vadd.f32 %v1315, %v1382
    %1384 = vmatmul.f32.gmra.mxu0 %v1321
    %v1385 = vpop.f32.mrf.mxu0
    %v1386 = vadd.f32 %v1315, %v1385
    %1387 = vmatmul.f32.gmra.mxu0 %v1324
    %v1388 = vpop.f32.mrf.mxu0
    %v1389 = vadd.f32 %v1315, %v1388
    %1390 = vmatmul.f32.gmra.mxu0 %v1327
    %v1391 = vpop.f32.mrf.mxu0
    %v1392 = vadd.f32 %v1315, %v1391
    %1393 = vmatmul.f32.gmra.mxu0 %v1330
    %v1394 = vpop.f32.mrf.mxu0
    %v1395 = vadd.f32 %v1315, %v1394
    %1396 = vmatmul.f32.gmra.mxu0 %v1333
    %v1397 = vpop.f32.mrf.mxu0
    %v1398 = vadd.f32 %v1315, %v1397
    %1399 = vmatmul.f32.gmra.mxu0 %v1336
    %v1400 = vpop.f32.mrf.mxu0
    %v1401 = vadd.f32 %v1315, %v1400
    %1402 = vmatmul.f32.gmra.mxu0 %v1339
    %v1403 = vpop.f32.mrf.mxu0
    %v1404 = vadd.f32 %v1315, %v1403
    %1405 = vmatmul.f32.gmra.mxu0 %v1342
    %v1406 = vpop.f32.mrf.mxu0
    %v1407 = vadd.f32 %v1315, %v1406
    %1408 = vmatmul.f32.gmra.mxu0 %v1345
    %v1409 = vpop.f32.mrf.mxu0
    %v1410 = vadd.f32 %v1315, %v1409
    %1411 = vmatmul.f32.gmra.mxu0 %v1348
    %v1412 = vpop.f32.mrf.mxu0
    %v1413 = vadd.f32 %v1315, %v1412
    %1414 = vmatmul.f32.gmra.mxu0 %v1351
    %v1415 = vpop.f32.mrf.mxu0
    %v1416 = vadd.f32 %v1315, %v1415
    %1417 = vmatmul.f32.gmra.mxu0 %v1354
    %v1418 = vpop.f32.mrf.mxu0
    %v1419 = vadd.f32 %v1315, %v1418
    %1420 = vmatmul.f32.gmra.mxu0 %v1357
    %v1421 = vpop.f32.mrf.mxu0
    %v1422 = vadd.f32 %v1315, %v1421
    %1423 = vmatmul.f32.gmra.mxu0 %v1360
    %v1424 = vpop.f32.mrf.mxu0
    %v1425 = vadd.f32 %v1315, %v1424
    %1426 = vmatmul.f32.gmra.mxu0 %v1363
    %v1427 = vpop.f32.mrf.mxu0
    %v1428 = vadd.f32 %v1315, %v1427
    %1429 = vdwg.mxu0
    %vm1430 = vcmp.ge.f32.partialorder %v1383, 0.0
    %vm1431 = vcmp.ge.f32.partialorder %v1386, 0.0
    %vm1432 = vcmp.ge.f32.partialorder %v1389, 0.0
    %vm1433 = vcmp.ge.f32.partialorder %v1392, 0.0
    %vm1434 = vcmp.ge.f32.partialorder %v1395, 0.0
    %vm1435 = vcmp.ge.f32.partialorder %v1398, 0.0
    %vm1436 = vcmp.ge.f32.partialorder %v1401, 0.0
    %vm1437 = vcmp.ge.f32.partialorder %v1404, 0.0
    %vm1438 = vcmp.ge.f32.partialorder %v1407, 0.0
    %vm1439 = vcmp.ge.f32.partialorder %v1410, 0.0
    %vm1440 = vcmp.ge.f32.partialorder %v1413, 0.0
    %vm1441 = vcmp.ge.f32.partialorder %v1416, 0.0
    %vm1442 = vcmp.ge.f32.partialorder %v1419, 0.0
    %vm1443 = vcmp.ge.f32.partialorder %v1422, 0.0
    %vm1444 = vcmp.ge.f32.partialorder %v1425, 0.0
    %vm1445 = vcmp.ge.f32.partialorder %v1428, 0.0
    %v1446 = vmul.f32 %v1383, 0.1
    %v1447 = vmul.f32 %v1386, 0.1
    %v1448 = vmul.f32 %v1389, 0.1
    %v1449 = vmul.f32 %v1392, 0.1
    %v1450 = vmul.f32 %v1395, 0.1
    %v1451 = vmul.f32 %v1398, 0.1
    %v1452 = vmul.f32 %v1401, 0.1
    %v1453 = vmul.f32 %v1404, 0.1
    %v1454 = vmul.f32 %v1407, 0.1
    %v1455 = vmul.f32 %v1410, 0.1
    %v1456 = vmul.f32 %v1413, 0.1
    %v1457 = vmul.f32 %v1416, 0.1
    %v1458 = vmul.f32 %v1419, 0.1
    %v1459 = vmul.f32 %v1422, 0.1
    %v1460 = vmul.f32 %v1425, 0.1
    %v1461 = vmul.f32 %v1428, 0.1
    %v1462 = vsel %vm1430, %v1383, %v1446
    %v1463 = vsel %vm1431, %v1386, %v1447
    %v1464 = vsel %vm1432, %v1389, %v1448
    %v1465 = vsel %vm1433, %v1392, %v1449
    %v1466 = vsel %vm1434, %v1395, %v1450
    %v1467 = vsel %vm1435, %v1398, %v1451
    %v1468 = vsel %vm1436, %v1401, %v1452
    %v1469 = vsel %vm1437, %v1404, %v1453
    %v1470 = vsel %vm1438, %v1407, %v1454
    %v1471 = vsel %vm1439, %v1410, %v1455
    %v1472 = vsel %vm1440, %v1413, %v1456
    %v1473 = vsel %vm1441, %v1416, %v1457
    %v1474 = vsel %vm1442, %v1419, %v1458
    %v1475 = vsel %vm1443, %v1422, %v1459
    %v1476 = vsel %vm1444, %v1425, %v1460
    %v1477 = vsel %vm1445, %v1428, %v1461
    %v1478 = vld [vmem:[%s13] sm:$0xff]
    %v1479 = vld [vmem:[%s13 + $0x8] sm:$0xff]
    %v1480 = vld [vmem:[%s13 + $0x10] sm:$0xff]
    %v1481 = vld [vmem:[%s13 + $0x18] sm:$0xff]
    %v1482 = vld [vmem:[%s13 + $0x20] sm:$0xff]
    %v1483 = vld [vmem:[%s13 + $0x28] sm:$0xff]
    %v1484 = vld [vmem:[%s13 + $0x30] sm:$0xff]
    %v1485 = vld [vmem:[%s13 + $0x38] sm:$0xff]
    %v1486 = vld [vmem:[%s14] sm:$0x1]
    %v1488 = vperm.slane %v1486, 0
    %v1491 = vsel %vm768, %v1462, 0
    %v1494 = vsel %vm768, %v1463, 0
    %v1497 = vsel %vm768, %v1464, 0
    %v1500 = vsel %vm768, %v1465, 0
    %v1503 = vsel %vm768, %v1466, 0
    %v1506 = vsel %vm768, %v1467, 0
    %v1509 = vsel %vm768, %v1468, 0
    %v1512 = vsel %vm768, %v1469, 0
    %v1515 = vsel %vm768, %v1470, 0
    %v1518 = vsel %vm768, %v1471, 0
    %v1521 = vsel %vm768, %v1472, 0
    %v1524 = vsel %vm768, %v1473, 0
    %v1527 = vsel %vm768, %v1474, 0
    %v1530 = vsel %vm768, %v1475, 0
    %v1533 = vsel %vm768, %v1476, 0
    %v1536 = vsel %vm768, %v1477, 0
    %1538 = vmatpush.msra.mxu0 0.0
    %1539 = vmatpush.msra.mxu0 0.0
    %1540 = vmatpush.msra.mxu0 0.0
    %1541 = vmatpush.msra.mxu0 0.0
    %1542 = vmatpush.msra.mxu0 0.0
    %1543 = vmatpush.msra.mxu0 0.0
    %1544 = vmatpush.msra.mxu0 0.0
    %1545 = vmatpush.msra.mxu0 0.0
    %1546 = vmatpush.msra.mxu0 %v1485
    %1547 = vmatpush.msra.mxu0 %v1484
    %1548 = vmatpush.msra.mxu0 %v1483
    %1549 = vmatpush.msra.mxu0 %v1482
    %1550 = vmatpush.msra.mxu0 %v1481
    %1551 = vmatpush.msra.mxu0 %v1480
    %1552 = vmatpush.msra.mxu0 %v1479
    %1553 = vmatpush.msra.mxu0 %v1478
    %1554 = vmatmul.f32.gmra.mxu0 %v1491
    %v1555 = vpop.f32.mrf.mxu0
    %v1556 = vadd.f32 %v1488, %v1555
    %1557 = vmatmul.f32.gmra.mxu0 %v1494
    %v1558 = vpop.f32.mrf.mxu0
    %v1559 = vadd.f32 %v1488, %v1558
    %1560 = vmatmul.f32.gmra.mxu0 %v1497
    %v1561 = vpop.f32.mrf.mxu0
    %v1562 = vadd.f32 %v1488, %v1561
    %1563 = vmatmul.f32.gmra.mxu0 %v1500
    %v1564 = vpop.f32.mrf.mxu0
    %v1565 = vadd.f32 %v1488, %v1564
    %1566 = vmatmul.f32.gmra.mxu0 %v1503
    %v1567 = vpop.f32.mrf.mxu0
    %v1568 = vadd.f32 %v1488, %v1567
    %1569 = vmatmul.f32.gmra.mxu0 %v1506
    %v1570 = vpop.f32.mrf.mxu0
    %v1571 = vadd.f32 %v1488, %v1570
    %1572 = vmatmul.f32.gmra.mxu0 %v1509
    %v1573 = vpop.f32.mrf.mxu0
    %v1574 = vadd.f32 %v1488, %v1573
    %1575 = vmatmul.f32.gmra.mxu0 %v1512
    %v1576 = vpop.f32.mrf.mxu0
    %v1577 = vadd.f32 %v1488, %v1576
    %1578 = vmatmul.f32.gmra.mxu0 %v1515
    %v1579 = vpop.f32.mrf.mxu0
    %v1580 = vadd.f32 %v1488, %v1579
    %1581 = vmatmul.f32.gmra.mxu0 %v1518
    %v1582 = vpop.f32.mrf.mxu0
    %v1583 = vadd.f32 %v1488, %v1582
    %1584 = vmatmul.f32.gmra.mxu0 %v1521
    %v1585 = vpop.f32.mrf.mxu0
    %v1586 = vadd.f32 %v1488, %v1585
    %1587 = vmatmul.f32.gmra.mxu0 %v1524
    %v1588 = vpop.f32.mrf.mxu0
    %v1589 = vadd.f32 %v1488, %v1588
    %1590 = vmatmul.f32.gmra.mxu0 %v1527
    %v1591 = vpop.f32.mrf.mxu0
    %v1592 = vadd.f32 %v1488, %v1591
    %1593 = vmatmul.f32.gmra.mxu0 %v1530
    %v1594 = vpop.f32.mrf.mxu0
    %v1595 = vadd.f32 %v1488, %v1594
    %1596 = vmatmul.f32.gmra.mxu0 %v1533
    %v1597 = vpop.f32.mrf.mxu0
    %v1598 = vadd.f32 %v1488, %v1597
    %1599 = vmatmul.f32.gmra.mxu0 %v1536
    %v1600 = vpop.f32.mrf.mxu0
    %v1601 = vadd.f32 %v1488, %v1600
    %1602 = vdwg.mxu0
    %v1603 = vmul.f32 %v1556, %v1556
    %v1604 = vmul.f32 %v1559, %v1559
    %v1605 = vmul.f32 %v1562, %v1562
    %v1606 = vmul.f32 %v1565, %v1565
    %v1607 = vmul.f32 %v1568, %v1568
    %v1608 = vmul.f32 %v1571, %v1571
    %v1609 = vmul.f32 %v1574, %v1574
    %v1610 = vmul.f32 %v1577, %v1577
    %v1611 = vmul.f32 %v1580, %v1580
    %v1612 = vmul.f32 %v1583, %v1583
    %v1613 = vmul.f32 %v1586, %v1586
    %v1614 = vmul.f32 %v1589, %v1589
    %v1615 = vmul.f32 %v1592, %v1592
    %v1616 = vmul.f32 %v1595, %v1595
    %v1617 = vmul.f32 %v1598, %v1598
    %v1618 = vmul.f32 %v1601, %v1601
    %vm1619 = vcmask 261120
    %v1620 = vsel %vm1619, %v1603, 0.0
    %1621 = vadd.xlane.f32.xlu0 %v1620
    %v1622 = vpop.xlane.xlu0 %1621
    %v1623 = vsel %vm1619, %v1604, 0.0
    %1624 = vadd.xlane.f32.xlu0 %v1623
    %v1625 = vpop.xlane.xlu0 %1624
    %v1626 = vsel %vm1619, %v1605, 0.0
    %1627 = vadd.xlane.f32.xlu0 %v1626
    %v1628 = vpop.xlane.xlu0 %1627
    %v1629 = vsel %vm1619, %v1606, 0.0
    %1630 = vadd.xlane.f32.xlu0 %v1629
    %v1631 = vpop.xlane.xlu0 %1630
    %v1632 = vsel %vm1619, %v1607, 0.0
    %1633 = vadd.xlane.f32.xlu0 %v1632
    %v1634 = vpop.xlane.xlu0 %1633
    %v1635 = vsel %vm1619, %v1608, 0.0
    %1636 = vadd.xlane.f32.xlu0 %v1635
    %v1637 = vpop.xlane.xlu0 %1636
    %v1638 = vsel %vm1619, %v1609, 0.0
    %1639 = vadd.xlane.f32.xlu0 %v1638
    %v1640 = vpop.xlane.xlu0 %1639
    %v1641 = vsel %vm1619, %v1610, 0.0
    %1642 = vadd.xlane.f32.xlu0 %v1641
    %v1643 = vpop.xlane.xlu0 %1642
    %v1644 = vsel %vm1619, %v1611, 0.0
    %1645 = vadd.xlane.f32.xlu0 %v1644
    %v1646 = vpop.xlane.xlu0 %1645
    %v1647 = vsel %vm1619, %v1612, 0.0
    %1648 = vadd.xlane.f32.xlu0 %v1647
    %v1649 = vpop.xlane.xlu0 %1648
    %v1650 = vsel %vm1619, %v1613, 0.0
    %1651 = vadd.xlane.f32.xlu0 %v1650
    %v1652 = vpop.xlane.xlu0 %1651
    %v1653 = vsel %vm1619, %v1614, 0.0
    %1654 = vadd.xlane.f32.xlu0 %v1653
    %v1655 = vpop.xlane.xlu0 %1654
    %v1656 = vsel %vm1619, %v1615, 0.0
    %1657 = vadd.xlane.f32.xlu0 %v1656
    %v1658 = vpop.xlane.xlu0 %1657
    %v1659 = vsel %vm1619, %v1616, 0.0
    %1660 = vadd.xlane.f32.xlu0 %v1659
    %v1661 = vpop.xlane.xlu0 %1660
    %v1662 = vsel %vm1619, %v1617, 0.0
    %1663 = vadd.xlane.f32.xlu0 %v1662
    %v1664 = vpop.xlane.xlu0 %1663
    %v1665 = vsel %vm1619, %v1618, 0.0
    %1666 = vadd.xlane.f32.xlu0 %v1665
    %v1667 = vpop.xlane.xlu0 %1666
    %v1668 = vrsqrt.pop %v1622
    %v1669 = vmul.f32 %v1668, %v1622
    %v1670 = vmul.f32 %v1669, %v1668
    %v1671 = vmul.f32 0.5, %v1670
    %v1672 = vsub.f32 1.5, %v1671
    %v1673 = vmul.f32 %v1668, %v1672
    %vm1674 = vweird.f32 %v1622
    %vm1675 = vweird.f32 %v1668
    %vm1676 = vmor %vm1674, %vm1675
    %v1677 = vsel %vm1676, %v1668, %v1673
    %v1678 = vrsqrt.pop %v1625
    %v1679 = vmul.f32 %v1678, %v1625
    %v1680 = vmul.f32 %v1679, %v1678
    %v1681 = vmul.f32 0.5, %v1680
    %v1682 = vsub.f32 1.5, %v1681
    %v1683 = vmul.f32 %v1678, %v1682
    %vm1684 = vweird.f32 %v1625
    %vm1685 = vweird.f32 %v1678
    %vm1686 = vmor %vm1684, %vm1685
    %v1687 = vsel %vm1686, %v1678, %v1683
    %v1688 = vrsqrt.pop %v1628
    %v1689 = vmul.f32 %v1688, %v1628
    %v1690 = vmul.f32 %v1689, %v1688
    %v1691 = vmul.f32 0.5, %v1690
    %v1692 = vsub.f32 1.5, %v1691
    %v1693 = vmul.f32 %v1688, %v1692
    %vm1694 = vweird.f32 %v1628
    %vm1695 = vweird.f32 %v1688
    %vm1696 = vmor %vm1694, %vm1695
    %v1697 = vsel %vm1696, %v1688, %v1693
    %v1698 = vrsqrt.pop %v1631
    %v1699 = vmul.f32 %v1698, %v1631
    %v1700 = vmul.f32 %v1699, %v1698
    %v1701 = vmul.f32 0.5, %v1700
    %v1702 = vsub.f32 1.5, %v1701
    %v1703 = vmul.f32 %v1698, %v1702
    %vm1704 = vweird.f32 %v1631
    %vm1705 = vweird.f32 %v1698
    %vm1706 = vmor %vm1704, %vm1705
    %v1707 = vsel %vm1706, %v1698, %v1703
    %v1708 = vrsqrt.pop %v1634
    %v1709 = vmul.f32 %v1708, %v1634
    %v1710 = vmul.f32 %v1709, %v1708
    %v1711 = vmul.f32 0.5, %v1710
    %v1712 = vsub.f32 1.5, %v1711
    %v1713 = vmul.f32 %v1708, %v1712
    %vm1714 = vweird.f32 %v1634
    %vm1715 = vweird.f32 %v1708
    %vm1716 = vmor %vm1714, %vm1715
    %v1717 = vsel %vm1716, %v1708, %v1713
    %v1718 = vrsqrt.pop %v1637
    %v1719 = vmul.f32 %v1718, %v1637
    %v1720 = vmul.f32 %v1719, %v1718
    %v1721 = vmul.f32 0.5, %v1720
    %v1722 = vsub.f32 1.5, %v1721
    %v1723 = vmul.f32 %v1718, %v1722
    %vm1724 = vweird.f32 %v1637
    %vm1725 = vweird.f32 %v1718
    %vm1726 = vmor %vm1724, %vm1725
    %v1727 = vsel %vm1726, %v1718, %v1723
    %v1728 = vrsqrt.pop %v1640
    %v1729 = vmul.f32 %v1728, %v1640
    %v1730 = vmul.f32 %v1729, %v1728
    %v1731 = vmul.f32 0.5, %v1730
    %v1732 = vsub.f32 1.5, %v1731
    %v1733 = vmul.f32 %v1728, %v1732
    %vm1734 = vweird.f32 %v1640
    %vm1735 = vweird.f32 %v1728
    %vm1736 = vmor %vm1734, %vm1735
    %v1737 = vsel %vm1736, %v1728, %v1733
    %v1738 = vrsqrt.pop %v1643
    %v1739 = vmul.f32 %v1738, %v1643
    %v1740 = vmul.f32 %v1739, %v1738
    %v1741 = vmul.f32 0.5, %v1740
    %v1742 = vsub.f32 1.5, %v1741
    %v1743 = vmul.f32 %v1738, %v1742
    %vm1744 = vweird.f32 %v1643
    %vm1745 = vweird.f32 %v1738
    %vm1746 = vmor %vm1744, %vm1745
    %v1747 = vsel %vm1746, %v1738, %v1743
    %v1748 = vrsqrt.pop %v1646
    %v1749 = vmul.f32 %v1748, %v1646
    %v1750 = vmul.f32 %v1749, %v1748
    %v1751 = vmul.f32 0.5, %v1750
    %v1752 = vsub.f32 1.5, %v1751
    %v1753 = vmul.f32 %v1748, %v1752
    %vm1754 = vweird.f32 %v1646
    %vm1755 = vweird.f32 %v1748
    %vm1756 = vmor %vm1754, %vm1755
    %v1757 = vsel %vm1756, %v1748, %v1753
    %v1758 = vrsqrt.pop %v1649
    %v1759 = vmul.f32 %v1758, %v1649
    %v1760 = vmul.f32 %v1759, %v1758
    %v1761 = vmul.f32 0.5, %v1760
    %v1762 = vsub.f32 1.5, %v1761
    %v1763 = vmul.f32 %v1758, %v1762
    %vm1764 = vweird.f32 %v1649
    %vm1765 = vweird.f32 %v1758
    %vm1766 = vmor %vm1764, %vm1765
    %v1767 = vsel %vm1766, %v1758, %v1763
    %v1768 = vrsqrt.pop %v1652
    %v1769 = vmul.f32 %v1768, %v1652
    %v1770 = vmul.f32 %v1769, %v1768
    %v1771 = vmul.f32 0.5, %v1770
    %v1772 = vsub.f32 1.5, %v1771
    %v1773 = vmul.f32 %v1768, %v1772
    %vm1774 = vweird.f32 %v1652
    %vm1775 = vweird.f32 %v1768
    %vm1776 = vmor %vm1774, %vm1775
    %v1777 = vsel %vm1776, %v1768, %v1773
    %v1778 = vrsqrt.pop %v1655
    %v1779 = vmul.f32 %v1778, %v1655
    %v1780 = vmul.f32 %v1779, %v1778
    %v1781 = vmul.f32 0.5, %v1780
    %v1782 = vsub.f32 1.5, %v1781
    %v1783 = vmul.f32 %v1778, %v1782
    %vm1784 = vweird.f32 %v1655
    %vm1785 = vweird.f32 %v1778
    %vm1786 = vmor %vm1784, %vm1785
    %v1787 = vsel %vm1786, %v1778, %v1783
    %v1788 = vrsqrt.pop %v1658
    %v1789 = vmul.f32 %v1788, %v1658
    %v1790 = vmul.f32 %v1789, %v1788
    %v1791 = vmul.f32 0.5, %v1790
    %v1792 = vsub.f32 1.5, %v1791
    %v1793 = vmul.f32 %v1788, %v1792
    %vm1794 = vweird.f32 %v1658
    %vm1795 = vweird.f32 %v1788
    %vm1796 = vmor %vm1794, %vm1795
    %v1797 = vsel %vm1796, %v1788, %v1793
    %v1798 = vrsqrt.pop %v1661
    %v1799 = vmul.f32 %v1798, %v1661
    %v1800 = vmul.f32 %v1799, %v1798
    %v1801 = vmul.f32 0.5, %v1800
    %v1802 = vsub.f32 1.5, %v1801
    %v1803 = vmul.f32 %v1798, %v1802
    %vm1804 = vweird.f32 %v1661
    %vm1805 = vweird.f32 %v1798
    %vm1806 = vmor %vm1804, %vm1805
    %v1807 = vsel %vm1806, %v1798, %v1803
    %v1808 = vrsqrt.pop %v1664
    %v1809 = vmul.f32 %v1808, %v1664
    %v1810 = vmul.f32 %v1809, %v1808
    %v1811 = vmul.f32 0.5, %v1810
    %v1812 = vsub.f32 1.5, %v1811
    %v1813 = vmul.f32 %v1808, %v1812
    %vm1814 = vweird.f32 %v1664
    %vm1815 = vweird.f32 %v1808
    %vm1816 = vmor %vm1814, %vm1815
    %v1817 = vsel %vm1816, %v1808, %v1813
    %v1818 = vrsqrt.pop %v1667
    %v1819 = vmul.f32 %v1818, %v1667
    %v1820 = vmul.f32 %v1819, %v1818
    %v1821 = vmul.f32 0.5, %v1820
    %v1822 = vsub.f32 1.5, %v1821
    %v1823 = vmul.f32 %v1818, %v1822
    %vm1824 = vweird.f32 %v1667
    %vm1825 = vweird.f32 %v1818
    %vm1826 = vmor %vm1824, %vm1825
    %v1827 = vsel %vm1826, %v1818, %v1823
    %v1828 = vmul.f32 %v1556, %v1677
    %v1829 = vmul.f32 %v1559, %v1687
    %v1830 = vmul.f32 %v1562, %v1697
    %v1831 = vmul.f32 %v1565, %v1707
    %v1832 = vmul.f32 %v1568, %v1717
    %v1833 = vmul.f32 %v1571, %v1727
    %v1834 = vmul.f32 %v1574, %v1737
    %v1835 = vmul.f32 %v1577, %v1747
    %v1836 = vmul.f32 %v1580, %v1757
    %v1837 = vmul.f32 %v1583, %v1767
    %v1838 = vmul.f32 %v1586, %v1777
    %v1839 = vmul.f32 %v1589, %v1787
    %v1840 = vmul.f32 %v1592, %v1797
    %v1841 = vmul.f32 %v1595, %v1807
    %v1842 = vmul.f32 %v1598, %v1817
    %v1843 = vmul.f32 %v1601, %v1827
    %v1844 = vld [vmem:[%s15] sm:$0xff]
    %v1845 = vld [vmem:[%s15 + $0x8] sm:$0xff]
    %v1846 = vld [vmem:[%s15 + $0x10] sm:$0xff]
    %v1847 = vld [vmem:[%s15 + $0x18] sm:$0xff]
    %v1848 = vld [vmem:[%s16] sm:$0x1]
    %v1850 = vperm.slane %v1848, 0
    %v1853 = vsel %vm1619, %v1828, 0
    %v1856 = vsel %vm1619, %v1829, 0
    %v1859 = vsel %vm1619, %v1830, 0
    %v1862 = vsel %vm1619, %v1831, 0
    %v1865 = vsel %vm1619, %v1832, 0
    %v1868 = vsel %vm1619, %v1833, 0
    %v1871 = vsel %vm1619, %v1834, 0
    %v1874 = vsel %vm1619, %v1835, 0
    %v1877 = vsel %vm1619, %v1836, 0
    %v1880 = vsel %vm1619, %v1837, 0
    %v1883 = vsel %vm1619, %v1838, 0
    %v1886 = vsel %vm1619, %v1839, 0
    %v1889 = vsel %vm1619, %v1840, 0
    %v1892 = vsel %vm1619, %v1841, 0
    %v1895 = vsel %vm1619, %v1842, 0
    %v1898 = vsel %vm1619, %v1843, 0
    %1900 = vmatpush.msra.mxu0 0.0
    %1901 = vmatpush.msra.mxu0 0.0
    %1902 = vmatpush.msra.mxu0 0.0
    %1903 = vmatpush.msra.mxu0 0.0
    %1904 = vmatpush.msra.mxu0 0.0
    %1905 = vmatpush.msra.mxu0 0.0
    %1906 = vmatpush.msra.mxu0 0.0
    %1907 = vmatpush.msra.mxu0 0.0
    %1908 = vmatpush.msra.mxu0 0.0
    %1909 = vmatpush.msra.mxu0 0.0
    %1910 = vmatpush.msra.mxu0 0.0
    %1911 = vmatpush.msra.mxu0 0.0
    %1912 = vmatpush.msra.mxu0 %v1847
    %1913 = vmatpush.msra.mxu0 %v1846
    %1914 = vmatpush.msra.mxu0 %v1845
    %1915 = vmatpush.msra.mxu0 %v1844
    %1916 = vmatmul.f32.gmra.mxu0 %v1853
    %v1917 = vpop.f32.mrf.mxu0
    %v1918 = vadd.f32 %v1850, %v1917
    %1919 = vmatmul.f32.gmra.mxu0 %v1856
    %v1920 = vpop.f32.mrf.mxu0
    %v1921 = vadd.f32 %v1850, %v1920
    %1922 = vmatmul.f32.gmra.mxu0 %v1859
    %v1923 = vpop.f32.mrf.mxu0
    %v1924 = vadd.f32 %v1850, %v1923
    %1925 = vmatmul.f32.gmra.mxu0 %v1862
    %v1926 = vpop.f32.mrf.mxu0
    %v1927 = vadd.f32 %v1850, %v1926
    %1928 = vmatmul.f32.gmra.mxu0 %v1865
    %v1929 = vpop.f32.mrf.mxu0
    %v1930 = vadd.f32 %v1850, %v1929
    %1931 = vmatmul.f32.gmra.mxu0 %v1868
    %v1932 = vpop.f32.mrf.mxu0
    %v1933 = vadd.f32 %v1850, %v1932
    %1934 = vmatmul.f32.gmra.mxu0 %v1871
    %v1935 = vpop.f32.mrf.mxu0
    %v1936 = vadd.f32 %v1850, %v1935
    %1937 = vmatmul.f32.gmra.mxu0 %v1874
    %v1938 = vpop.f32.mrf.mxu0
    %v1939 = vadd.f32 %v1850, %v1938
    %1940 = vmatmul.f32.gmra.mxu0 %v1877
    %v1941 = vpop.f32.mrf.mxu0
    %v1942 = vadd.f32 %v1850, %v1941
    %1943 = vmatmul.f32.gmra.mxu0 %v1880
    %v1944 = vpop.f32.mrf.mxu0
    %v1945 = vadd.f32 %v1850, %v1944
    %1946 = vmatmul.f32.gmra.mxu0 %v1883
    %v1947 = vpop.f32.mrf.mxu0
    %v1948 = vadd.f32 %v1850, %v1947
    %1949 = vmatmul.f32.gmra.mxu0 %v1886
    %v1950 = vpop.f32.mrf.mxu0
    %v1951 = vadd.f32 %v1850, %v1950
    %1952 = vmatmul.f32.gmra.mxu0 %v1889
    %v1953 = vpop.f32.mrf.mxu0
    %v1954 = vadd.f32 %v1850, %v1953
    %1955 = vmatmul.f32.gmra.mxu0 %v1892
    %v1956 = vpop.f32.mrf.mxu0
    %v1957 = vadd.f32 %v1850, %v1956
    %1958 = vmatmul.f32.gmra.mxu0 %v1895
    %v1959 = vpop.f32.mrf.mxu0
    %v1960 = vadd.f32 %v1850, %v1959
    %1961 = vmatmul.f32.gmra.mxu0 %v1898
    %v1962 = vpop.f32.mrf.mxu0
    %v1963 = vadd.f32 %v1850, %v1962
    %1964 = vdwg.mxu0
    %1965 = vst [vmem:[#allocation2] sm:$0xff] %v1918
    %1966 = vst [vmem:[#allocation2 + $0x8] sm:$0xff] %v1921
    %1967 = vst [vmem:[#allocation2 + $0x10] sm:$0xff] %v1924
    %1968 = vst [vmem:[#allocation2 + $0x18] sm:$0xff] %v1927
    %1969 = vst [vmem:[#allocation2 + $0x20] sm:$0xff] %v1930
    %1970 = vst [vmem:[#allocation2 + $0x28] sm:$0xff] %v1933
    %1971 = vst [vmem:[#allocation2 + $0x30] sm:$0xff] %v1936
    %1972 = vst [vmem:[#allocation2 + $0x38] sm:$0xff] %v1939
    %1973 = vst [vmem:[#allocation2 + $0x40] sm:$0xff] %v1942
    %1974 = vst [vmem:[#allocation2 + $0x48] sm:$0xff] %v1945
    %1975 = vst [vmem:[#allocation2 + $0x50] sm:$0xff] %v1948
    %1976 = vst [vmem:[#allocation2 + $0x58] sm:$0xff] %v1951
    %1977 = vst [vmem:[#allocation2 + $0x60] sm:$0xff] %v1954
    %1978 = vst [vmem:[#allocation2 + $0x68] sm:$0xff] %v1957
    %1979 = vst [vmem:[#allocation2 + $0x70] sm:$0xff] %v1960
    %1980 = vst [vmem:[#allocation2 + $0x78] sm:$0xff] %v1963
    // Predicated region
    $region70: #{tpu_custom_call.1} parent=1 // pred_check
      _
    $region71: #{tpu_custom_call.1} parent=1 // pred_check_branch
      %1982 = sbr.rel (0) target = $region73
    $region72: #{tpu_custom_call.1} parent=1 // pred_region
      %1984 = vsyncadd [#allocation3], 0
      %s1985 = sshll.u32 [#allocation2], 4
      %s1986 = int_to_ptr.vmem [resolvable:$true] %s1985
      %s1987 = sshll.u32 %s17, 4
      %s1988 = int_to_ptr.hbm [resolvable:$true] %s1987
      %1993 = dma.vmem_to_hbm [thread:$0]  %s1986, 2048, %s1988, [#allocation3], 128, 128, 8
    $region73: #{tpu_custom_call.1} parent=1 // pred_fallthru
      _
    // Predicated region
    $region74: #{tpu_custom_call.1} parent=1 // pred_check
      _
    $region75: #{tpu_custom_call.1} parent=1 // pred_check_branch
      %1995 = sbr.rel (0) target = $region77
    $region76: #{tpu_custom_call.1} parent=1 // pred_region
      %1997 = dma.done [#allocation3], 2048
    $region77: #{tpu_custom_call.1} parent=1 // pred_fallthru
      _
    %1998 = vsyncpa [#allocation3], 1

</llo_original>
